<compile_context>
chip_gen: v5e
topology: v5e:2x2
jax: 0.10.0
libtpu: 0.0.40
codegen_flags: <defaults>
</compile_context>

<pallas_src>
import math
from functools import partial

import jax
import jax.numpy as jnp
from jax.experimental import pallas as pl
from jax.experimental.pallas import tpu as pltpu


# ------------------------------ kernel helpers ------------------------------

def _ln(x, g, b, eps=1e-5):
    # row-wise LayerNorm over the last dim, f32 math, eps = PyTorch default
    mean = jnp.mean(x, axis=-1, keepdims=True)
    var = jnp.mean((x - mean) ** 2, axis=-1, keepdims=True)
    return (x - mean) * jax.lax.rsqrt(var + eps) * g + b


# ------------------------------- fused kernel -------------------------------

def _encoder_kernel(x_ref, row0_ref, pos_ref,
                    ln1g, ln1b, wqkv, bqkv, wo, bo,
                    ln2g, ln2b, w1, b1, w2, b2,
                    clf_w, clf_b,
                    o_ref, act_ref,
                    *, num_heads, head_dim, num_layers):
    """Grid = (B, L).  One (batch, layer) step per invocation.

    act_ref : (S, D) f32 VMEM scratch, resident across the L axis.
    o_ref   : (1, 1, Npad) logits block, written only at the last layer.
    """
    l = pl.program_id(1)
    S, D = act_ref.shape
    bf16 = jnp.bfloat16

    # ---- layer 0: fuse CLS-token prepend + positional-embedding add ----
    @pl.when(l == 0)
    def _():
        row0 = row0_ref[0].astype(jnp.float32)                    # (1, D)
        patches = (x_ref[0] + pos_ref[0]).astype(jnp.float32)     # (N, D)
        act_ref[...] = jnp.concatenate([row0, patches], axis=0)   # (S, D)

    x = act_ref[...]                                              # (S, D) f32

    # ---------------- attention sub-block (pre-norm) ----------------
    xn = _ln(x, ln1g[0], ln1b[0])
    # fused lane-dense QKV; 1/sqrt(Dh) already folded into the Q columns
    qkv = jnp.dot(xn.astype(bf16), wqkv[0],
                  preferred_element_type=jnp.float32) + bqkv[0]   # (S, 3D) f32
    qkv_b = qkv.astype(bf16)
    wo_all = wo[0]                                                # (D, D) bf16

    attn = jnp.zeros((S, D), jnp.float32)
    for h in range(num_heads):
        lo = h * head_dim
        q = qkv_b[:, lo:lo + head_dim]                            # (S, Dh)
        k = qkv_b[:, D + lo:D + lo + head_dim]
        v = qkv_b[:, 2 * D + lo:2 * D + lo + head_dim]
        s = jnp.dot(q, k.T, preferred_element_type=jnp.float32)   # (S, S) f32
        s = s - jnp.max(s, axis=-1, keepdims=True)
        p = jnp.exp(s)
        p = p * pl.reciprocal(jnp.sum(p, axis=-1, keepdims=True), approx=True)
        ctx = jnp.dot(p.astype(bf16), v,
                      preferred_element_type=jnp.float32)         # (S, Dh)
        # accumulate the out-projection per head (lane-dense, no concat)
        attn = attn + jnp.dot(ctx.astype(bf16), wo_all[lo:lo + head_dim, :],
                              preferred_element_type=jnp.float32)
    x = x + attn + bo[0]                                          # dropout = id

    # ---------------- FFN sub-block (pre-norm) ----------------
    xn2 = _ln(x, ln2g[0], ln2b[0])
    h1 = jnp.dot(xn2.astype(bf16), w1[0],
                 preferred_element_type=jnp.float32) + b1[0]
    h1 = jnp.maximum(h1, 0.0)
    ffn = jnp.dot(h1.astype(bf16), w2[0],
                  preferred_element_type=jnp.float32) + b2[0]
    x = x + ffn                                                   # dropout = id

    act_ref[...] = x                                              # carry to l+1

    # ---- last layer: classifier on the CLS row only ----
    @pl.when(l == num_layers - 1)
    def _():
        cls_row = x[0:1, :]                                       # (1, D)
        logits = jnp.dot(cls_row.astype(bf16), clf_w[...],
                         preferred_element_type=jnp.float32) + clf_b[...]
        o_ref[0] = logits.astype(o_ref.dtype)                     # (1, Npad)


# ------------------------------- pallas wrapper ------------------------------

def forward(params, x_img, *, num_heads, num_classes):
    B, N, D = x_img.shape
    S = N + 1
    L = params['w_qkv'].shape[0]
    Dh = D // num_heads
    Npad = params['clf_w_pad'].shape[1]

    # CLS row already has its positional embedding added (1x1xD, trivial)
    row0 = params['cls_token'] + params['pos_embed'][:, :1, :]    # (1, 1, D)
    pos = params['pos_embed'][:, 1:S, :]                          # (1, N, D)

    kernel = partial(_encoder_kernel, num_heads=num_heads, head_dim=Dh,
                     num_layers=L)

    wl = lambda shape: pl.BlockSpec(shape, lambda b, l: (l, 0, 0))   # per-layer
    c3 = lambda shape: pl.BlockSpec(shape, lambda b, l: (0, 0, 0))   # constant
    c2 = lambda shape: pl.BlockSpec(shape, lambda b, l: (0, 0))

    in_specs = [
        pl.BlockSpec((1, N, D), lambda b, l: (b, 0, 0)),   # x_img (per batch)
        c3((1, 1, D)),                                     # cls row (+pos0)
        c3((1, N, D)),                                     # pos embed (patches)
        wl((1, 1, D)), wl((1, 1, D)),                      # ln1 gamma/beta
        wl((1, D, 3 * D)), wl((1, 1, 3 * D)),              # fused QKV (bf16)
        wl((1, D, D)), wl((1, 1, D)),                      # out-proj (bf16)
        wl((1, 1, D)), wl((1, 1, D)),                      # ln2 gamma/beta
        wl((1, D, 4 * D)), wl((1, 1, 4 * D)),              # FFN up (bf16)
        wl((1, 4 * D, D)), wl((1, 1, D)),                  # FFN down (bf16)
        c2((D, Npad)), c2((1, Npad)),                      # classifier (padded)
    ]
    args = [x_img, row0, pos,
            params['ln1_g'], params['ln1_b'],
            params['w_qkv'], params['b_qkv'],
            params['w_out'], params['b_out'],
            params['ln2_g'], params['ln2_b'],
            params['w1'], params['b1'],
            params['w2'], params['b2'],
            params['clf_w_pad'], params['clf_b_pad']]

    logits = pl.pallas_call(
        kernel,
        out_shape=jax.ShapeDtypeStruct((B, 1, Npad), jnp.float32),
        grid=(B, L),
        in_specs=in_specs,
        out_specs=pl.BlockSpec((1, 1, Npad), lambda b, l: (b, 0, 0)),
        scratch_shapes=[pltpu.VMEM((S, D), jnp.float32)],
        compiler_params=pltpu.CompilerParams(
            dimension_semantics=("parallel", "arbitrary"),
            vmem_limit_bytes=32 * 1024 * 1024),
    )(*args)
    return logits[:, 0, :num_classes]                              # (B, C)


# ------------------------------- parameter init ------------------------------

def init_params(key, D, num_heads, num_classes, num_patches, num_layers=3):
    keys = iter(jax.random.split(key, 8 * num_layers + 4))
    nk = lambda: next(keys)
    normal = lambda s: 0.02 * jax.random.normal(nk(), s, jnp.float32)
    Dh = D // num_heads
    scale = 1.0 / math.sqrt(float(Dh))
    bf16 = jnp.bfloat16

    w_qkv, b_qkv, w_out, b_out, w1, b1, w2, b2 = ([] for _ in range(8))
    for _ in range(num_layers):
        w_in = normal((D, 3 * D))                      # packed q,k,v (in_proj^T)
        b_in = normal((3 * D,))
        # fold 1/sqrt(Dh) attention scale into the Q columns
        w_in = w_in.at[:, :D].multiply(scale)
        b_in = b_in.at[:D].multiply(scale)
        w_qkv.append(w_in.astype(bf16))
        b_qkv.append(b_in.reshape(1, 3 * D))
        w_out.append(normal((D, D)).astype(bf16))
        b_out.append(normal((1, D)))
        w1.append(normal((D, 4 * D)).astype(bf16))
        b1.append(normal((1, 4 * D)))
        w2.append(normal((4 * D, D)).astype(bf16))
        b2.append(normal((1, D)))

    L = num_layers
    stack = lambda xs: jnp.stack(xs, axis=0)

    # classifier weights padded to a multiple of 128 output columns (lane-dense)
    n_pad = ((num_classes + 127) // 128) * 128
    clf_w = normal((D, num_classes))
    clf_b = normal((num_classes,))
    clf_w_pad = (jnp.zeros((D, n_pad), jnp.float32)
                 .at[:, :num_classes].set(clf_w).astype(bf16))
    clf_b_pad = jnp.zeros((1, n_pad), jnp.float32).at[0, :num_classes].set(clf_b)

    return {
        'cls_token': normal((1, 1, D)),
        'pos_embed': normal((1, num_patches + 1, D)),
        'ln1_g': jnp.ones((L, 1, D), jnp.float32),
        'ln1_b': jnp.zeros((L, 1, D), jnp.float32),
        'ln2_g': jnp.ones((L, 1, D), jnp.float32),
        'ln2_b': jnp.zeros((L, 1, D), jnp.float32),
        'w_qkv': stack(w_qkv), 'b_qkv': stack(b_qkv),
        'w_out': stack(w_out), 'b_out': stack(b_out),
        'w1': stack(w1), 'b1': stack(b1),
        'w2': stack(w2), 'b2': stack(b2),
        'clf_w_pad': clf_w_pad, 'clf_b_pad': clf_b_pad,
    }


# ----------------------------------- main -----------------------------------

if __name__ == "__main__":
    # small config consistent with ImageEncoder(hidden_dim, num_heads,
    # num_classes, num_patches) — scaled-down hidden/patches for the test.
    HIDDEN, HEADS, NUM_CLASSES, NUM_PATCHES = 128, 4, 3, 16
    B = 2

    key = jax.random.PRNGKey(0)
    kp, ki = jax.random.split(key, 2)
    params = init_params(kp, HIDDEN, HEADS, NUM_CLASSES, NUM_PATCHES)
    x_img = jax.random.normal(ki, (B, NUM_PATCHES, HIDDEN), jnp.float32)

    fwd = jax.jit(partial(forward, num_heads=HEADS, num_classes=NUM_CLASSES))
    logits = fwd(params, x_img)
    jax.block_until_ready(logits)
    assert logits.shape == (B, NUM_CLASSES) and logits.dtype == jnp.float32
    assert bool(jnp.all(jnp.isfinite(logits)))
    print("KERNEL_OK")
</pallas_src>

<mosaic_0001>
module attributes {stable_mosaic.version = 11 : i64} {
  func.func @_encoder_kernel(%arg0: i32, %arg1: i32, %arg2: memref<1x16x128xf32, #tpu.memory_space<vmem>>, %arg3: memref<1x1x128xf32, #tpu.memory_space<vmem>>, %arg4: memref<1x16x128xf32, #tpu.memory_space<vmem>>, %arg5: memref<1x1x128xf32, #tpu.memory_space<vmem>>, %arg6: memref<1x1x128xf32, #tpu.memory_space<vmem>>, %arg7: memref<1x128x384xbf16, #tpu.memory_space<vmem>>, %arg8: memref<1x1x384xf32, #tpu.memory_space<vmem>>, %arg9: memref<1x128x128xbf16, #tpu.memory_space<vmem>>, %arg10: memref<1x1x128xf32, #tpu.memory_space<vmem>>, %arg11: memref<1x1x128xf32, #tpu.memory_space<vmem>>, %arg12: memref<1x1x128xf32, #tpu.memory_space<vmem>>, %arg13: memref<1x128x512xbf16, #tpu.memory_space<vmem>>, %arg14: memref<1x1x512xf32, #tpu.memory_space<vmem>>, %arg15: memref<1x512x128xbf16, #tpu.memory_space<vmem>>, %arg16: memref<1x1x128xf32, #tpu.memory_space<vmem>>, %arg17: memref<128x128xbf16, #tpu.memory_space<vmem>>, %arg18: memref<1x128xf32, #tpu.memory_space<vmem>>, %arg19: memref<1x1x128xf32, #tpu.memory_space<vmem>>, %arg20: memref<17x128xf32, #tpu.memory_space<vmem>>) attributes {dimension_semantics = [#tpu.dimension_semantics<parallel>, #tpu.dimension_semantics<arbitrary>], iteration_bounds = array<i64: 2, 3>, scalar_prefetch = 0 : i64, scratch_operands = 1 : i64, tpu.core_type = #tpu.core_type<tc>, window_params = [{transform_indices = @transform_0, window_bounds = array<i64: 1, 16, 128>}, {pipeline_mode = #tpu.pipeline_mode<synchronous>, transform_indices = @transform_1, window_bounds = array<i64: 1, 1, 128>}, {pipeline_mode = #tpu.pipeline_mode<synchronous>, transform_indices = @transform_2, window_bounds = array<i64: 1, 16, 128>}, {transform_indices = @transform_3, window_bounds = array<i64: 1, 1, 128>}, {transform_indices = @transform_4, window_bounds = array<i64: 1, 1, 128>}, {transform_indices = @transform_5, window_bounds = array<i64: 1, 128, 384>}, {transform_indices = @transform_6, window_bounds = array<i64: 1, 1, 384>}, {transform_indices = @transform_7, window_bounds = array<i64: 1, 128, 128>}, {transform_indices = @transform_8, window_bounds = array<i64: 1, 1, 128>}, {transform_indices = @transform_9, window_bounds = array<i64: 1, 1, 128>}, {transform_indices = @transform_10, window_bounds = array<i64: 1, 1, 128>}, {transform_indices = @transform_11, window_bounds = array<i64: 1, 128, 512>}, {transform_indices = @transform_12, window_bounds = array<i64: 1, 1, 512>}, {transform_indices = @transform_13, window_bounds = array<i64: 1, 512, 128>}, {transform_indices = @transform_14, window_bounds = array<i64: 1, 1, 128>}, {pipeline_mode = #tpu.pipeline_mode<synchronous>, transform_indices = @transform_15, window_bounds = array<i64: 128, 128>}, {pipeline_mode = #tpu.pipeline_mode<synchronous>, transform_indices = @transform_16, window_bounds = array<i64: 1, 128>}, {transform_indices = @transform_17, window_bounds = array<i64: 1, 1, 128>}]} {
    %c0_i32 = arith.constant 0 : i32
    %0 = arith.cmpi eq, %arg1, %c0_i32 : i32
    %1 = arith.extui %0 : i1 to i32
    %c0_i32_0 = arith.constant 0 : i32
    %2 = arith.cmpi ne, %1, %c0_i32_0 : i32
    scf.if %2 {
      %c0_75 = arith.constant 0 : index
      %c0_76 = arith.constant 0 : index
      %c0_77 = arith.constant 0 : index
      %180 = vector.load %arg3[%c0_75, %c0_76, %c0_77] : memref<1x1x128xf32, #tpu.memory_space<vmem>>, vector<1x1x128xf32>
      %181 = vector.shape_cast %180 : vector<1x1x128xf32> to vector<1x128xf32>
      %c0_78 = arith.constant 0 : index
      %c0_79 = arith.constant 0 : index
      %c0_80 = arith.constant 0 : index
      %182 = vector.load %arg2[%c0_78, %c0_79, %c0_80] : memref<1x16x128xf32, #tpu.memory_space<vmem>>, vector<1x16x128xf32>
      %183 = vector.shape_cast %182 : vector<1x16x128xf32> to vector<16x128xf32>
      %c0_81 = arith.constant 0 : index
      %c0_82 = arith.constant 0 : index
      %c0_83 = arith.constant 0 : index
      %184 = vector.load %arg4[%c0_81, %c0_82, %c0_83] : memref<1x16x128xf32, #tpu.memory_space<vmem>>, vector<1x16x128xf32>
      %185 = vector.shape_cast %184 : vector<1x16x128xf32> to vector<16x128xf32>
      %186 = arith.addf %183, %185 : vector<16x128xf32>
      %187 = tpu.concatenate %181, %186 in 0 : vector<1x128xf32>, vector<16x128xf32> -> vector<17x128xf32>
      %c0_84 = arith.constant 0 : index
      %c0_85 = arith.constant 0 : index
      %188 = vector.load %arg20[%c0_84, %c0_85] : memref<17x128xf32, #tpu.memory_space<vmem>>, vector<17x128xf32>
      tpu.vector_store %arg20[%c0_84, %c0_85], %187 {strides = array<i32>} : memref<17x128xf32, #tpu.memory_space<vmem>>, vector<17x128xf32>,
    } else {
    }
    %c0 = arith.constant 0 : index
    %c0_1 = arith.constant 0 : index
    %3 = vector.load %arg20[%c0, %c0_1] : memref<17x128xf32, #tpu.memory_space<vmem>>, vector<17x128xf32>
    %c0_2 = arith.constant 0 : index
    %c0_3 = arith.constant 0 : index
    %c0_4 = arith.constant 0 : index
    %4 = vector.load %arg5[%c0_2, %c0_3, %c0_4] : memref<1x1x128xf32, #tpu.memory_space<vmem>>, vector<1x1x128xf32>
    %5 = vector.shape_cast %4 : vector<1x1x128xf32> to vector<1x128xf32>
    %c0_5 = arith.constant 0 : index
    %c0_6 = arith.constant 0 : index
    %c0_7 = arith.constant 0 : index
    %6 = vector.load %arg6[%c0_5, %c0_6, %c0_7] : memref<1x1x128xf32, #tpu.memory_space<vmem>>, vector<1x1x128xf32>
    %7 = vector.shape_cast %6 : vector<1x1x128xf32> to vector<1x128xf32>
    %cst = arith.constant dense<0.000000e+00> : vector<17xf32>
    %8 = vector.multi_reduction <add>, %3, %cst [1] : vector<17x128xf32> to vector<17xf32>
    %9 = vector.shape_cast %8 : vector<17xf32> to vector<17x1xf32>
    %cst_8 = arith.constant 1.280000e+02 : f32
    %10 = vector.broadcast %cst_8 : f32 to vector<17x1xf32>
    %11 = arith.divf %9, %10 : vector<17x1xf32>
    %12 = vector.broadcast %11 : vector<17x1xf32> to vector<17x128xf32>
    %13 = arith.subf %3, %12 : vector<17x128xf32>
    %14 = arith.mulf %13, %13 : vector<17x128xf32>
    %cst_9 = arith.constant dense<0.000000e+00> : vector<17xf32>
    %15 = vector.multi_reduction <add>, %14, %cst_9 [1] : vector<17x128xf32> to vector<17xf32>
    %16 = vector.shape_cast %15 : vector<17xf32> to vector<17x1xf32>
    %cst_10 = arith.constant 1.280000e+02 : f32
    %17 = vector.broadcast %cst_10 : f32 to vector<17x1xf32>
    %18 = arith.divf %16, %17 : vector<17x1xf32>
    %19 = vector.broadcast %11 : vector<17x1xf32> to vector<17x128xf32>
    %20 = arith.subf %3, %19 : vector<17x128xf32>
    %cst_11 = arith.constant 9.99999974E-6 : f32
    %21 = vector.broadcast %cst_11 : f32 to vector<17x1xf32>
    %22 = arith.addf %18, %21 : vector<17x1xf32>
    %23 = math.rsqrt %22 : vector<17x1xf32>
    %24 = vector.broadcast %23 : vector<17x1xf32> to vector<17x128xf32>
    %25 = arith.mulf %20, %24 : vector<17x128xf32>
    %26 = vector.broadcast %5 : vector<1x128xf32> to vector<17x128xf32>
    %27 = arith.mulf %25, %26 : vector<17x128xf32>
    %28 = vector.broadcast %7 : vector<1x128xf32> to vector<17x128xf32>
    %29 = arith.addf %27, %28 : vector<17x128xf32>
    %30 = arith.truncf %29 : vector<17x128xf32> to vector<17x128xbf16>
    %c0_12 = arith.constant 0 : index
    %c0_13 = arith.constant 0 : index
    %c0_14 = arith.constant 0 : index
    %31 = vector.load %arg7[%c0_12, %c0_13, %c0_14] : memref<1x128x384xbf16, #tpu.memory_space<vmem>>, vector<1x128x384xbf16>
    %32 = vector.shape_cast %31 : vector<1x128x384xbf16> to vector<128x384xbf16>
    %cst_15 = arith.constant dense<0.000000e+00> : vector<17x384xf32>
    %33 = tpu.matmul %30, %32, %cst_15 {dimension_numbers = #tpu.dot_dimension_numbers<[1], [0], [0], [1], [0, 0, 1, 1], [], []>} : vector<17x128xbf16>, vector<128x384xbf16>, vector<17x384xf32> -> vector<17x384xf32>
    %c0_16 = arith.constant 0 : index
    %c0_17 = arith.constant 0 : index
    %c0_18 = arith.constant 0 : index
    %34 = vector.load %arg8[%c0_16, %c0_17, %c0_18] : memref<1x1x384xf32, #tpu.memory_space<vmem>>, vector<1x1x384xf32>
    %35 = vector.shape_cast %34 : vector<1x1x384xf32> to vector<1x384xf32>
    %36 = vector.broadcast %35 : vector<1x384xf32> to vector<17x384xf32>
    %37 = arith.addf %33, %36 : vector<17x384xf32>
    %38 = arith.truncf %37 : vector<17x384xf32> to vector<17x384xbf16>
    %c0_19 = arith.constant 0 : index
    %c0_20 = arith.constant 0 : index
    %c0_21 = arith.constant 0 : index
    %39 = vector.load %arg9[%c0_19, %c0_20, %c0_21] : memref<1x128x128xbf16, #tpu.memory_space<vmem>>, vector<1x128x128xbf16>
    %40 = vector.shape_cast %39 : vector<1x128x128xbf16> to vector<128x128xbf16>
    %cst_22 = arith.constant 0.000000e+00 : f32
    %41 = vector.broadcast %cst_22 : f32 to vector<17x128xf32>
    %42 = vector.extract_strided_slice %38 {offsets = [0, 0], sizes = [17, 32], strides = [1, 1]} : vector<17x384xbf16> to vector<17x32xbf16>
    %43 = vector.extract_strided_slice %38 {offsets = [0, 128], sizes = [17, 32], strides = [1, 1]} : vector<17x384xbf16> to vector<17x32xbf16>
    %44 = vector.extract_strided_slice %38 {offsets = [0, 256], sizes = [17, 32], strides = [1, 1]} : vector<17x384xbf16> to vector<17x32xbf16>
    %45 = tpu.transpose %43, [1, 0] : vector<17x32xbf16> -> vector<32x17xbf16>
    %cst_23 = arith.constant dense<0.000000e+00> : vector<17x17xf32>
    %46 = tpu.matmul %42, %45, %cst_23 {dimension_numbers = #tpu.dot_dimension_numbers<[1], [0], [0], [1], [0, 0, 1, 1], [], []>} : vector<17x32xbf16>, vector<32x17xbf16>, vector<17x17xf32> -> vector<17x17xf32>
    %cst_24 = arith.constant dense<0xFF800000> : vector<17xf32>
    %47 = vector.multi_reduction <maximumf>, %46, %cst_24 [1] : vector<17x17xf32> to vector<17xf32>
    %48 = vector.shape_cast %47 : vector<17xf32> to vector<17x1xf32>
    %49 = vector.broadcast %48 : vector<17x1xf32> to vector<17x17xf32>
    %50 = arith.subf %46, %49 : vector<17x17xf32>
    %51 = math.exp %50 : vector<17x17xf32>
    %cst_25 = arith.constant dense<0.000000e+00> : vector<17xf32>
    %52 = vector.multi_reduction <add>, %51, %cst_25 [1] : vector<17x17xf32> to vector<17xf32>
    %53 = vector.shape_cast %52 : vector<17xf32> to vector<17x1xf32>
    %54 = tpu.reciprocal %53 {approx = true} : vector<17x1xf32> -> vector<17x1xf32>
    %55 = vector.broadcast %54 : vector<17x1xf32> to vector<17x17xf32>
    %56 = arith.mulf %51, %55 : vector<17x17xf32>
    %57 = arith.truncf %56 : vector<17x17xf32> to vector<17x17xbf16>
    %cst_26 = arith.constant dense<0.000000e+00> : vector<17x32xf32>
    %58 = tpu.matmul %57, %44, %cst_26 {dimension_numbers = #tpu.dot_dimension_numbers<[1], [0], [0], [1], [0, 0, 1, 1], [], []>} : vector<17x17xbf16>, vector<17x32xbf16>, vector<17x32xf32> -> vector<17x32xf32>
    %59 = arith.truncf %58 : vector<17x32xf32> to vector<17x32xbf16>
    %60 = vector.extract_strided_slice %40 {offsets = [0, 0], sizes = [32, 128], strides = [1, 1]} : vector<128x128xbf16> to vector<32x128xbf16>
    %cst_27 = arith.constant dense<0.000000e+00> : vector<17x128xf32>
    %61 = tpu.matmul %59, %60, %cst_27 {dimension_numbers = #tpu.dot_dimension_numbers<[1], [0], [0], [1], [0, 0, 1, 1], [], []>} : vector<17x32xbf16>, vector<32x128xbf16>, vector<17x128xf32> -> vector<17x128xf32>
    %62 = arith.addf %41, %61 : vector<17x128xf32>
    %63 = vector.extract_strided_slice %38 {offsets = [0, 32], sizes = [17, 32], strides = [1, 1]} : vector<17x384xbf16> to vector<17x32xbf16>
    %64 = vector.extract_strided_slice %38 {offsets = [0, 160], sizes = [17, 32], strides = [1, 1]} : vector<17x384xbf16> to vector<17x32xbf16>
    %65 = vector.extract_strided_slice %38 {offsets = [0, 288], sizes = [17, 32], strides = [1, 1]} : vector<17x384xbf16> to vector<17x32xbf16>
    %66 = tpu.transpose %64, [1, 0] : vector<17x32xbf16> -> vector<32x17xbf16>
    %cst_28 = arith.constant dense<0.000000e+00> : vector<17x17xf32>
    %67 = tpu.matmul %63, %66, %cst_28 {dimension_numbers = #tpu.dot_dimension_numbers<[1], [0], [0], [1], [0, 0, 1, 1], [], []>} : vector<17x32xbf16>, vector<32x17xbf16>, vector<17x17xf32> -> vector<17x17xf32>
    %cst_29 = arith.constant dense<0xFF800000> : vector<17xf32>
    %68 = vector.multi_reduction <maximumf>, %67, %cst_29 [1] : vector<17x17xf32> to vector<17xf32>
    %69 = vector.shape_cast %68 : vector<17xf32> to vector<17x1xf32>
    %70 = vector.broadcast %69 : vector<17x1xf32> to vector<17x17xf32>
    %71 = arith.subf %67, %70 : vector<17x17xf32>
    %72 = math.exp %71 : vector<17x17xf32>
    %cst_30 = arith.constant dense<0.000000e+00> : vector<17xf32>
    %73 = vector.multi_reduction <add>, %72, %cst_30 [1] : vector<17x17xf32> to vector<17xf32>
    %74 = vector.shape_cast %73 : vector<17xf32> to vector<17x1xf32>
    %75 = tpu.reciprocal %74 {approx = true} : vector<17x1xf32> -> vector<17x1xf32>
    %76 = vector.broadcast %75 : vector<17x1xf32> to vector<17x17xf32>
    %77 = arith.mulf %72, %76 : vector<17x17xf32>
    %78 = arith.truncf %77 : vector<17x17xf32> to vector<17x17xbf16>
    %cst_31 = arith.constant dense<0.000000e+00> : vector<17x32xf32>
    %79 = tpu.matmul %78, %65, %cst_31 {dimension_numbers = #tpu.dot_dimension_numbers<[1], [0], [0], [1], [0, 0, 1, 1], [], []>} : vector<17x17xbf16>, vector<17x32xbf16>, vector<17x32xf32> -> vector<17x32xf32>
    %80 = arith.truncf %79 : vector<17x32xf32> to vector<17x32xbf16>
    %81 = vector.extract_strided_slice %40 {offsets = [32, 0], sizes = [32, 128], strides = [1, 1]} : vector<128x128xbf16> to vector<32x128xbf16>
    %cst_32 = arith.constant dense<0.000000e+00> : vector<17x128xf32>
    %82 = tpu.matmul %80, %81, %cst_32 {dimension_numbers = #tpu.dot_dimension_numbers<[1], [0], [0], [1], [0, 0, 1, 1], [], []>} : vector<17x32xbf16>, vector<32x128xbf16>, vector<17x128xf32> -> vector<17x128xf32>
    %83 = arith.addf %62, %82 : vector<17x128xf32>
    %84 = vector.extract_strided_slice %38 {offsets = [0, 64], sizes = [17, 32], strides = [1, 1]} : vector<17x384xbf16> to vector<17x32xbf16>
    %85 = vector.extract_strided_slice %38 {offsets = [0, 192], sizes = [17, 32], strides = [1, 1]} : vector<17x384xbf16> to vector<17x32xbf16>
    %86 = vector.extract_strided_slice %38 {offsets = [0, 320], sizes = [17, 32], strides = [1, 1]} : vector<17x384xbf16> to vector<17x32xbf16>
    %87 = tpu.transpose %85, [1, 0] : vector<17x32xbf16> -> vector<32x17xbf16>
    %cst_33 = arith.constant dense<0.000000e+00> : vector<17x17xf32>
    %88 = tpu.matmul %84, %87, %cst_33 {dimension_numbers = #tpu.dot_dimension_numbers<[1], [0], [0], [1], [0, 0, 1, 1], [], []>} : vector<17x32xbf16>, vector<32x17xbf16>, vector<17x17xf32> -> vector<17x17xf32>
    %cst_34 = arith.constant dense<0xFF800000> : vector<17xf32>
    %89 = vector.multi_reduction <maximumf>, %88, %cst_34 [1] : vector<17x17xf32> to vector<17xf32>
    %90 = vector.shape_cast %89 : vector<17xf32> to vector<17x1xf32>
    %91 = vector.broadcast %90 : vector<17x1xf32> to vector<17x17xf32>
    %92 = arith.subf %88, %91 : vector<17x17xf32>
    %93 = math.exp %92 : vector<17x17xf32>
    %cst_35 = arith.constant dense<0.000000e+00> : vector<17xf32>
    %94 = vector.multi_reduction <add>, %93, %cst_35 [1] : vector<17x17xf32> to vector<17xf32>
    %95 = vector.shape_cast %94 : vector<17xf32> to vector<17x1xf32>
    %96 = tpu.reciprocal %95 {approx = true} : vector<17x1xf32> -> vector<17x1xf32>
    %97 = vector.broadcast %96 : vector<17x1xf32> to vector<17x17xf32>
    %98 = arith.mulf %93, %97 : vector<17x17xf32>
    %99 = arith.truncf %98 : vector<17x17xf32> to vector<17x17xbf16>
    %cst_36 = arith.constant dense<0.000000e+00> : vector<17x32xf32>
    %100 = tpu.matmul %99, %86, %cst_36 {dimension_numbers = #tpu.dot_dimension_numbers<[1], [0], [0], [1], [0, 0, 1, 1], [], []>} : vector<17x17xbf16>, vector<17x32xbf16>, vector<17x32xf32> -> vector<17x32xf32>
    %101 = arith.truncf %100 : vector<17x32xf32> to vector<17x32xbf16>
    %102 = vector.extract_strided_slice %40 {offsets = [64, 0], sizes = [32, 128], strides = [1, 1]} : vector<128x128xbf16> to vector<32x128xbf16>
    %cst_37 = arith.constant dense<0.000000e+00> : vector<17x128xf32>
    %103 = tpu.matmul %101, %102, %cst_37 {dimension_numbers = #tpu.dot_dimension_numbers<[1], [0], [0], [1], [0, 0, 1, 1], [], []>} : vector<17x32xbf16>, vector<32x128xbf16>, vector<17x128xf32> -> vector<17x128xf32>
    %104 = arith.addf %83, %103 : vector<17x128xf32>
    %105 = vector.extract_strided_slice %38 {offsets = [0, 96], sizes = [17, 32], strides = [1, 1]} : vector<17x384xbf16> to vector<17x32xbf16>
    %106 = vector.extract_strided_slice %38 {offsets = [0, 224], sizes = [17, 32], strides = [1, 1]} : vector<17x384xbf16> to vector<17x32xbf16>
    %107 = vector.extract_strided_slice %38 {offsets = [0, 352], sizes = [17, 32], strides = [1, 1]} : vector<17x384xbf16> to vector<17x32xbf16>
    %108 = tpu.transpose %106, [1, 0] : vector<17x32xbf16> -> vector<32x17xbf16>
    %cst_38 = arith.constant dense<0.000000e+00> : vector<17x17xf32>
    %109 = tpu.matmul %105, %108, %cst_38 {dimension_numbers = #tpu.dot_dimension_numbers<[1], [0], [0], [1], [0, 0, 1, 1], [], []>} : vector<17x32xbf16>, vector<32x17xbf16>, vector<17x17xf32> -> vector<17x17xf32>
    %cst_39 = arith.constant dense<0xFF800000> : vector<17xf32>
    %110 = vector.multi_reduction <maximumf>, %109, %cst_39 [1] : vector<17x17xf32> to vector<17xf32>
    %111 = vector.shape_cast %110 : vector<17xf32> to vector<17x1xf32>
    %112 = vector.broadcast %111 : vector<17x1xf32> to vector<17x17xf32>
    %113 = arith.subf %109, %112 : vector<17x17xf32>
    %114 = math.exp %113 : vector<17x17xf32>
    %cst_40 = arith.constant dense<0.000000e+00> : vector<17xf32>
    %115 = vector.multi_reduction <add>, %114, %cst_40 [1] : vector<17x17xf32> to vector<17xf32>
    %116 = vector.shape_cast %115 : vector<17xf32> to vector<17x1xf32>
    %117 = tpu.reciprocal %116 {approx = true} : vector<17x1xf32> -> vector<17x1xf32>
    %118 = vector.broadcast %117 : vector<17x1xf32> to vector<17x17xf32>
    %119 = arith.mulf %114, %118 : vector<17x17xf32>
    %120 = arith.truncf %119 : vector<17x17xf32> to vector<17x17xbf16>
    %cst_41 = arith.constant dense<0.000000e+00> : vector<17x32xf32>
    %121 = tpu.matmul %120, %107, %cst_41 {dimension_numbers = #tpu.dot_dimension_numbers<[1], [0], [0], [1], [0, 0, 1, 1], [], []>} : vector<17x17xbf16>, vector<17x32xbf16>, vector<17x32xf32> -> vector<17x32xf32>
    %122 = arith.truncf %121 : vector<17x32xf32> to vector<17x32xbf16>
    %123 = vector.extract_strided_slice %40 {offsets = [96, 0], sizes = [32, 128], strides = [1, 1]} : vector<128x128xbf16> to vector<32x128xbf16>
    %cst_42 = arith.constant dense<0.000000e+00> : vector<17x128xf32>
    %124 = tpu.matmul %122, %123, %cst_42 {dimension_numbers = #tpu.dot_dimension_numbers<[1], [0], [0], [1], [0, 0, 1, 1], [], []>} : vector<17x32xbf16>, vector<32x128xbf16>, vector<17x128xf32> -> vector<17x128xf32>
    %125 = arith.addf %104, %124 : vector<17x128xf32>
    %126 = arith.addf %3, %125 : vector<17x128xf32>
    %c0_43 = arith.constant 0 : index
    %c0_44 = arith.constant 0 : index
    %c0_45 = arith.constant 0 : index
    %127 = vector.load %arg10[%c0_43, %c0_44, %c0_45] : memref<1x1x128xf32, #tpu.memory_space<vmem>>, vector<1x1x128xf32>
    %128 = vector.shape_cast %127 : vector<1x1x128xf32> to vector<1x128xf32>
    %129 = vector.broadcast %128 : vector<1x128xf32> to vector<17x128xf32>
    %130 = arith.addf %126, %129 : vector<17x128xf32>
    %c0_46 = arith.constant 0 : index
    %c0_47 = arith.constant 0 : index
    %c0_48 = arith.constant 0 : index
    %131 = vector.load %arg11[%c0_46, %c0_47, %c0_48] : memref<1x1x128xf32, #tpu.memory_space<vmem>>, vector<1x1x128xf32>
    %132 = vector.shape_cast %131 : vector<1x1x128xf32> to vector<1x128xf32>
    %c0_49 = arith.constant 0 : index
    %c0_50 = arith.constant 0 : index
    %c0_51 = arith.constant 0 : index
    %133 = vector.load %arg12[%c0_49, %c0_50, %c0_51] : memref<1x1x128xf32, #tpu.memory_space<vmem>>, vector<1x1x128xf32>
    %134 = vector.shape_cast %133 : vector<1x1x128xf32> to vector<1x128xf32>
    %cst_52 = arith.constant dense<0.000000e+00> : vector<17xf32>
    %135 = vector.multi_reduction <add>, %130, %cst_52 [1] : vector<17x128xf32> to vector<17xf32>
    %136 = vector.shape_cast %135 : vector<17xf32> to vector<17x1xf32>
    %cst_53 = arith.constant 1.280000e+02 : f32
    %137 = vector.broadcast %cst_53 : f32 to vector<17x1xf32>
    %138 = arith.divf %136, %137 : vector<17x1xf32>
    %139 = vector.broadcast %138 : vector<17x1xf32> to vector<17x128xf32>
    %140 = arith.subf %130, %139 : vector<17x128xf32>
    %141 = arith.mulf %140, %140 : vector<17x128xf32>
    %cst_54 = arith.constant dense<0.000000e+00> : vector<17xf32>
    %142 = vector.multi_reduction <add>, %141, %cst_54 [1] : vector<17x128xf32> to vector<17xf32>
    %143 = vector.shape_cast %142 : vector<17xf32> to vector<17x1xf32>
    %cst_55 = arith.constant 1.280000e+02 : f32
    %144 = vector.broadcast %cst_55 : f32 to vector<17x1xf32>
    %145 = arith.divf %143, %144 : vector<17x1xf32>
    %146 = vector.broadcast %138 : vector<17x1xf32> to vector<17x128xf32>
    %147 = arith.subf %130, %146 : vector<17x128xf32>
    %cst_56 = arith.constant 9.99999974E-6 : f32
    %148 = vector.broadcast %cst_56 : f32 to vector<17x1xf32>
    %149 = arith.addf %145, %148 : vector<17x1xf32>
    %150 = math.rsqrt %149 : vector<17x1xf32>
    %151 = vector.broadcast %150 : vector<17x1xf32> to vector<17x128xf32>
    %152 = arith.mulf %147, %151 : vector<17x128xf32>
    %153 = vector.broadcast %132 : vector<1x128xf32> to vector<17x128xf32>
    %154 = arith.mulf %152, %153 : vector<17x128xf32>
    %155 = vector.broadcast %134 : vector<1x128xf32> to vector<17x128xf32>
    %156 = arith.addf %154, %155 : vector<17x128xf32>
    %157 = arith.truncf %156 : vector<17x128xf32> to vector<17x128xbf16>
    %c0_57 = arith.constant 0 : index
    %c0_58 = arith.constant 0 : index
    %c0_59 = arith.constant 0 : index
    %158 = vector.load %arg13[%c0_57, %c0_58, %c0_59] : memref<1x128x512xbf16, #tpu.memory_space<vmem>>, vector<1x128x512xbf16>
    %159 = vector.shape_cast %158 : vector<1x128x512xbf16> to vector<128x512xbf16>
    %cst_60 = arith.constant dense<0.000000e+00> : vector<17x512xf32>
    %160 = tpu.matmul %157, %159, %cst_60 {dimension_numbers = #tpu.dot_dimension_numbers<[1], [0], [0], [1], [0, 0, 1, 1], [], []>} : vector<17x128xbf16>, vector<128x512xbf16>, vector<17x512xf32> -> vector<17x512xf32>
    %c0_61 = arith.constant 0 : index
    %c0_62 = arith.constant 0 : index
    %c0_63 = arith.constant 0 : index
    %161 = vector.load %arg14[%c0_61, %c0_62, %c0_63] : memref<1x1x512xf32, #tpu.memory_space<vmem>>, vector<1x1x512xf32>
    %162 = vector.shape_cast %161 : vector<1x1x512xf32> to vector<1x512xf32>
    %163 = vector.broadcast %162 : vector<1x512xf32> to vector<17x512xf32>
    %164 = arith.addf %160, %163 : vector<17x512xf32>
    %cst_64 = arith.constant 0.000000e+00 : f32
    %165 = vector.broadcast %cst_64 : f32 to vector<17x512xf32>
    %166 = arith.maximumf %164, %165 : vector<17x512xf32>
    %167 = arith.truncf %166 : vector<17x512xf32> to vector<17x512xbf16>
    %c0_65 = arith.constant 0 : index
    %c0_66 = arith.constant 0 : index
    %c0_67 = arith.constant 0 : index
    %168 = vector.load %arg15[%c0_65, %c0_66, %c0_67] : memref<1x512x128xbf16, #tpu.memory_space<vmem>>, vector<1x512x128xbf16>
    %169 = vector.shape_cast %168 : vector<1x512x128xbf16> to vector<512x128xbf16>
    %cst_68 = arith.constant dense<0.000000e+00> : vector<17x128xf32>
    %170 = tpu.matmul %167, %169, %cst_68 {dimension_numbers = #tpu.dot_dimension_numbers<[1], [0], [0], [1], [0, 0, 1, 1], [], []>} : vector<17x512xbf16>, vector<512x128xbf16>, vector<17x128xf32> -> vector<17x128xf32>
    %c0_69 = arith.constant 0 : index
    %c0_70 = arith.constant 0 : index
    %c0_71 = arith.constant 0 : index
    %171 = vector.load %arg16[%c0_69, %c0_70, %c0_71] : memref<1x1x128xf32, #tpu.memory_space<vmem>>, vector<1x1x128xf32>
    %172 = vector.shape_cast %171 : vector<1x1x128xf32> to vector<1x128xf32>
    %173 = vector.broadcast %172 : vector<1x128xf32> to vector<17x128xf32>
    %174 = arith.addf %170, %173 : vector<17x128xf32>
    %175 = arith.addf %130, %174 : vector<17x128xf32>
    %c0_72 = arith.constant 0 : index
    %c0_73 = arith.constant 0 : index
    %176 = vector.load %arg20[%c0_72, %c0_73] : memref<17x128xf32, #tpu.memory_space<vmem>>, vector<17x128xf32>
    tpu.vector_store %arg20[%c0_72, %c0_73], %175 {strides = array<i32>} : memref<17x128xf32, #tpu.memory_space<vmem>>, vector<17x128xf32>,
    %c2_i32 = arith.constant 2 : i32
    %177 = arith.cmpi eq, %arg1, %c2_i32 : i32
    %178 = arith.extui %177 : i1 to i32
    %c0_i32_74 = arith.constant 0 : i32
    %179 = arith.cmpi ne, %178, %c0_i32_74 : i32
    scf.if %179 {
      %180 = vector.extract_strided_slice %175 {offsets = [0, 0], sizes = [1, 128], strides = [1, 1]} : vector<17x128xf32> to vector<1x128xf32>
      %181 = arith.truncf %180 : vector<1x128xf32> to vector<1x128xbf16>
      %c0_75 = arith.constant 0 : index
      %c0_76 = arith.constant 0 : index
      %182 = vector.load %arg17[%c0_75, %c0_76] : memref<128x128xbf16, #tpu.memory_space<vmem>>, vector<128x128xbf16>
      %cst_77 = arith.constant dense<0.000000e+00> : vector<1x128xf32>
      %183 = tpu.matmul %181, %182, %cst_77 {dimension_numbers = #tpu.dot_dimension_numbers<[1], [0], [0], [1], [0, 0, 1, 1], [], []>} : vector<1x128xbf16>, vector<128x128xbf16>, vector<1x128xf32> -> vector<1x128xf32>
      %c0_78 = arith.constant 0 : index
      %c0_79 = arith.constant 0 : index
      %184 = vector.load %arg18[%c0_78, %c0_79] : memref<1x128xf32, #tpu.memory_space<vmem>>, vector<1x128xf32>
      %185 = arith.addf %183, %184 : vector<1x128xf32>
      %c0_80 = arith.constant 0 : index
      %c0_81 = arith.constant 0 : index
      %c0_82 = arith.constant 0 : index
      %186 = vector.load %arg19[%c0_80, %c0_81, %c0_82] : memref<1x1x128xf32, #tpu.memory_space<vmem>>, vector<1x1x128xf32>
      %187 = vector.shape_cast %186 : vector<1x1x128xf32> to vector<1x128xf32>
      %188 = vector.shape_cast %185 : vector<1x128xf32> to vector<1x1x128xf32>
      tpu.vector_store %arg19[%c0_80, %c0_81, %c0_82], %188 {strides = array<i32>} : memref<1x1x128xf32, #tpu.memory_space<vmem>>, vector<1x1x128xf32>,
    } else {
    }
    return
  }
  func.func @transform_0(%arg0: i32, %arg1: i32) -> (i32, i32, i32) {
    %c0_i32 = arith.constant 0 : i32
    %c0_i32_0 = arith.constant 0 : i32
    %c0_i32_1 = arith.constant 0 : i32
    return %arg0, %c0_i32, %c0_i32_0 : i32, i32, i32
  }
  func.func @transform_1(%arg0: i32, %arg1: i32) -> (i32, i32, i32) {
    %c0_i32 = arith.constant 0 : i32
    %c0_i32_0 = arith.constant 0 : i32
    %c0_i32_1 = arith.constant 0 : i32
    %c0_i32_2 = arith.constant 0 : i32
    return %c0_i32, %c0_i32_0, %c0_i32_1 : i32, i32, i32
  }
  func.func @transform_2(%arg0: i32, %arg1: i32) -> (i32, i32, i32) {
    %c0_i32 = arith.constant 0 : i32
    %c0_i32_0 = arith.constant 0 : i32
    %c0_i32_1 = arith.constant 0 : i32
    %c0_i32_2 = arith.constant 0 : i32
    return %c0_i32, %c0_i32_0, %c0_i32_1 : i32, i32, i32
  }
  func.func @transform_3(%arg0: i32, %arg1: i32) -> (i32, i32, i32) {
    %c0_i32 = arith.constant 0 : i32
    %c0_i32_0 = arith.constant 0 : i32
    %c0_i32_1 = arith.constant 0 : i32
    return %arg1, %c0_i32, %c0_i32_0 : i32, i32, i32
  }
  func.func @transform_4(%arg0: i32, %arg1: i32) -> (i32, i32, i32) {
    %c0_i32 = arith.constant 0 : i32
    %c0_i32_0 = arith.constant 0 : i32
    %c0_i32_1 = arith.constant 0 : i32
    return %arg1, %c0_i32, %c0_i32_0 : i32, i32, i32
  }
  func.func @transform_5(%arg0: i32, %arg1: i32) -> (i32, i32, i32) {
    %c0_i32 = arith.constant 0 : i32
    %c0_i32_0 = arith.constant 0 : i32
    %c0_i32_1 = arith.constant 0 : i32
    return %arg1, %c0_i32, %c0_i32_0 : i32, i32, i32
  }
  func.func @transform_6(%arg0: i32, %arg1: i32) -> (i32, i32, i32) {
    %c0_i32 = arith.constant 0 : i32
    %c0_i32_0 = arith.constant 0 : i32
    %c0_i32_1 = arith.constant 0 : i32
    return %arg1, %c0_i32, %c0_i32_0 : i32, i32, i32
  }
  func.func @transform_7(%arg0: i32, %arg1: i32) -> (i32, i32, i32) {
    %c0_i32 = arith.constant 0 : i32
    %c0_i32_0 = arith.constant 0 : i32
    %c0_i32_1 = arith.constant 0 : i32
    return %arg1, %c0_i32, %c0_i32_0 : i32, i32, i32
  }
  func.func @transform_8(%arg0: i32, %arg1: i32) -> (i32, i32, i32) {
    %c0_i32 = arith.constant 0 : i32
    %c0_i32_0 = arith.constant 0 : i32
    %c0_i32_1 = arith.constant 0 : i32
    return %arg1, %c0_i32, %c0_i32_0 : i32, i32, i32
  }
  func.func @transform_9(%arg0: i32, %arg1: i32) -> (i32, i32, i32) {
    %c0_i32 = arith.constant 0 : i32
    %c0_i32_0 = arith.constant 0 : i32
    %c0_i32_1 = arith.constant 0 : i32
    return %arg1, %c0_i32, %c0_i32_0 : i32, i32, i32
  }
  func.func @transform_10(%arg0: i32, %arg1: i32) -> (i32, i32, i32) {
    %c0_i32 = arith.constant 0 : i32
    %c0_i32_0 = arith.constant 0 : i32
    %c0_i32_1 = arith.constant 0 : i32
    return %arg1, %c0_i32, %c0_i32_0 : i32, i32, i32
  }
  func.func @transform_11(%arg0: i32, %arg1: i32) -> (i32, i32, i32) {
    %c0_i32 = arith.constant 0 : i32
    %c0_i32_0 = arith.constant 0 : i32
    %c0_i32_1 = arith.constant 0 : i32
    return %arg1, %c0_i32, %c0_i32_0 : i32, i32, i32
  }
  func.func @transform_12(%arg0: i32, %arg1: i32) -> (i32, i32, i32) {
    %c0_i32 = arith.constant 0 : i32
    %c0_i32_0 = arith.constant 0 : i32
    %c0_i32_1 = arith.constant 0 : i32
    return %arg1, %c0_i32, %c0_i32_0 : i32, i32, i32
  }
  func.func @transform_13(%arg0: i32, %arg1: i32) -> (i32, i32, i32) {
    %c0_i32 = arith.constant 0 : i32
    %c0_i32_0 = arith.constant 0 : i32
    %c0_i32_1 = arith.constant 0 : i32
    return %arg1, %c0_i32, %c0_i32_0 : i32, i32, i32
  }
  func.func @transform_14(%arg0: i32, %arg1: i32) -> (i32, i32, i32) {
    %c0_i32 = arith.constant 0 : i32
    %c0_i32_0 = arith.constant 0 : i32
    %c0_i32_1 = arith.constant 0 : i32
    return %arg1, %c0_i32, %c0_i32_0 : i32, i32, i32
  }
  func.func @transform_15(%arg0: i32, %arg1: i32) -> (i32, i32) {
    %c0_i32 = arith.constant 0 : i32
    %c0_i32_0 = arith.constant 0 : i32
    %c0_i32_1 = arith.constant 0 : i32
    return %c0_i32, %c0_i32_0 : i32, i32
  }
  func.func @transform_16(%arg0: i32, %arg1: i32) -> (i32, i32) {
    %c0_i32 = arith.constant 0 : i32
    %c0_i32_0 = arith.constant 0 : i32
    %c0_i32_1 = arith.constant 0 : i32
    return %c0_i32, %c0_i32_0 : i32, i32
  }
  func.func @transform_17(%arg0: i32, %arg1: i32) -> (i32, i32, i32) {
    %c0_i32 = arith.constant 0 : i32
    %c0_i32_0 = arith.constant 0 : i32
    %c0_i32_1 = arith.constant 0 : i32
    return %arg0, %c0_i32, %c0_i32_0 : i32, i32, i32
  }
}

</mosaic_0001>

<llo_original>
// kernel: forward.1
$region0: #{forward.1}
  #allocation0 [shape = 'u32[]', space=smem, size = 0x4, offset = 0x4, fixed_abs, tag = 'smem constant byte address 0x4 - core index']
  #allocation1 [shape = 'u32[72,128]{1,0:T(1,128)}', space=vmem, size = 0x9000, scoped, tag = 'internal scratch']
  #allocation2 [shape = 'f32[17,128]{1,0:T(8,128)}', space=vmem, size = 0x3000, scoped, tag = 'scratch operand']
  %s0 = inlined_call_operand.hbm [shape: f32[2,16,128], index: 0, kind: input, shape index: {}]
  %s1 = inlined_call_operand.vmem [shape: f32[1,1,128], index: 1, kind: input, shape index: {}]
  %s2 = inlined_call_operand.vmem [shape: f32[1,16,128], index: 2, kind: input, shape index: {}]
  %s3 = inlined_call_operand.vmem [shape: f32[3,1,128], index: 3, kind: input, shape index: {}]
  %s4 = inlined_call_operand.vmem [shape: f32[3,1,128], index: 4, kind: input, shape index: {}]
  %s5 = inlined_call_operand.hbm [shape: bf16[3,128,384], index: 5, kind: input, shape index: {}]
  %s6 = inlined_call_operand.hbm [shape: f32[3,1,384], index: 6, kind: input, shape index: {}]
  %s7 = inlined_call_operand.hbm [shape: bf16[3,128,128], index: 7, kind: input, shape index: {}]
  %s8 = inlined_call_operand.hbm [shape: f32[3,1,128], index: 8, kind: input, shape index: {}]
  %s9 = inlined_call_operand.vmem [shape: f32[3,1,128], index: 9, kind: input, shape index: {}]
  %s10 = inlined_call_operand.vmem [shape: f32[3,1,128], index: 10, kind: input, shape index: {}]
  %s11 = inlined_call_operand.hbm [shape: bf16[3,128,512], index: 11, kind: input, shape index: {}]
  %s12 = inlined_call_operand.vmem [shape: f32[3,1,512], index: 12, kind: input, shape index: {}]
  %s13 = inlined_call_operand.hbm [shape: bf16[3,512,128], index: 13, kind: input, shape index: {}]
  %s14 = inlined_call_operand.hbm [shape: f32[3,1,128], index: 14, kind: input, shape index: {}]
  %s15 = inlined_call_operand.hbm [shape: bf16[128,128], index: 15, kind: input, shape index: {}]
  %s16 = inlined_call_operand.vmem [shape: f32[1,128], index: 16, kind: input, shape index: {}]
  %s17 = inlined_call_operand.hbm [shape: f32[2,1,128], index: 17, kind: output, shape index: {}]
  %s18 = sld [smem:[#allocation0]]
  $region145: #{forward.1} parent=0
    _
  %s20 = ssub.s32 1, %s18
  %s21 = scalar_select 0, %s20, %s18
  $region1: #{forward.1} parent=0
    #allocation3 [shape = 'u8[16384]{0}', space=vmem, size = 0x4000, scoped, tag = 'input window, operand 0']
    #allocation4 [shape = 's32[2]{0}', space=sflag, size = 0x8, scoped, tag = 'scoped memory for forward.1']
    #allocation5 [shape = 's32[2]{0}', space=sflag, size = 0x8, scoped, tag = 'scoped memory for forward.1']
    #allocation6 [shape = 'u8[196608]{0}', space=vmem, size = 0x30000, scoped, tag = 'input window, operand 5']
    #allocation7 [shape = 's32[2]{0}', space=sflag, size = 0x8, scoped, tag = 'scoped memory for forward.1']
    #allocation8 [shape = 'u8[3072]{0}', space=vmem, size = 0xc00, scoped, tag = 'input window, operand 6']
    #allocation9 [shape = 'u8[65536]{0}', space=vmem, size = 0x10000, scoped, tag = 'input window, operand 7']
    #allocation10 [shape = 's32[2]{0}', space=sflag, size = 0x8, scoped, tag = 'scoped memory for forward.1']
    #allocation11 [shape = 'u8[1024]{0}', space=vmem, size = 0x400, scoped, tag = 'input window, operand 8']
    #allocation12 [shape = 'u8[262144]{0}', space=vmem, size = 0x40000, scoped, tag = 'input window, operand 11']
    #allocation13 [shape = 's32[2]{0}', space=sflag, size = 0x8, scoped, tag = 'scoped memory for forward.1']
    #allocation14 [shape = 'u8[262144]{0}', space=vmem, size = 0x40000, scoped, tag = 'input window, operand 13']
    #allocation15 [shape = 'u8[1024]{0}', space=vmem, size = 0x400, scoped, tag = 'input window, operand 14']
    #allocation16 [shape = 's32[2]{0}', space=sflag, size = 0x8, scoped, tag = 'scoped memory for forward.1']
    #allocation17 [shape = 'u8[32768]{0}', space=vmem, size = 0x8000, scoped, tag = 'input window, operand 15, single buffered']
    #allocation18 [shape = 'u8[1024]{0}', space=vmem, size = 0x400, scoped, tag = 'output window, operand 0']
    %22 = vsyncpa [#allocation4], 0
    %s23 = scalar_lea.sflag [#allocation4], 1
    %24 = vsyncpa %s23, 0
    %25 = vsyncpa [#allocation7], 0
    %s26 = scalar_lea.sflag [#allocation7], 1
    %27 = vsyncpa %s26, 0
    %28 = vsyncpa [#allocation10], 0
    %s29 = scalar_lea.sflag [#allocation10], 1
    %30 = vsyncpa %s29, 0
    %31 = vsyncpa [#allocation13], 0
    %s32 = scalar_lea.sflag [#allocation13], 1
    %33 = vsyncpa %s32, 0
    %34 = vsyncpa [#allocation16], 0
    %s35 = scalar_lea.sflag [#allocation16], 1
    %36 = vsyncpa %s35, 0
    %37 = vsyncpa [#allocation5], 0
    %s38 = scalar_lea.sflag [#allocation5], 1
    %39 = vsyncpa %s38, 0
    loop: start=0, step=1, limit=8
    $region2: #{forward.1} parent=1 // loop_pre_header
      _
    $region3: #{forward.1} parent=1 // loop_header
      %s41 = sphi 0, %s45
      %p42 = scmp.ge.s32.totalorder %s41, 8
      %s48 = sphi 0, %s60
      %s49 = sphi 0, %s56
      %s50 = sphi 0, %s48
      %s51 = sphi 0, %s49
      %s52 = sphi 0, %s50
      %s53 = sphi 0, %s51
      %s63 = sphi 0, %s65
      %s66 = sphi 0, %s63
      %s67 = sphi 0, %s66
      %s83 = sphi 0, %s67
      %s87 = sphi 0, %s87
      %s89 = sphi 0, %s87
      %s90 = sphi 0, %s89
      %s104 = sphi 0, %s90
      %s108 = sphi 0, %s108
      %s110 = sphi 0, %s108
      %s111 = sphi 0, %s110
      %s125 = sphi 0, %s111
      %s131 = sphi 0, %s133
      %s134 = sphi 0, %s131
      %s135 = sphi 0, %s134
      %s151 = sphi 0, %s135
      %s157 = sphi 0, %s159
      %s160 = sphi 0, %s157
      %s161 = sphi 0, %s160
      %s177 = sphi 0, %s161
      %s183 = sphi 0, %s185
      %s186 = sphi 0, %s183
      %s187 = sphi 0, %s186
      %s203 = sphi 0, %s187
      %s209 = sphi 0, %s211
      %s212 = sphi 0, %s209
      %s213 = sphi 0, %s212
      %s229 = sphi 0, %s213
      %s235 = sphi 0, %s237
      %s238 = sphi 0, %s235
      %s239 = sphi 0, %s238
      %s255 = sphi 0, %s239
      %s261 = sphi 0, %s263
      %s264 = sphi 0, %s261
      %s265 = sphi 0, %s264
      %s281 = sphi 0, %s265
      %s287 = sphi 0, %s289
      %s290 = sphi 0, %s287
      %s291 = sphi 0, %s290
      %s307 = sphi 0, %s291
      %s313 = sphi 0, %s315
      %s316 = sphi 0, %s313
      %s317 = sphi 0, %s316
      %s333 = sphi 0, %s317
      %s339 = sphi 0, %s341
      %s342 = sphi 0, %s339
      %s343 = sphi 0, %s342
      %s359 = sphi 0, %s343
      %s365 = sphi 0, %s367
      %s368 = sphi 0, %s365
      %s369 = sphi 0, %s368
      %s385 = sphi 0, %s369
      %s391 = sphi 0, %s393
      %s394 = sphi 0, %s391
      %s395 = sphi 0, %s394
      %s411 = sphi 0, %s395
      %s417 = sphi 0, %s419
      %s420 = sphi 0, %s417
      %s421 = sphi 0, %s420
      %s437 = sphi 0, %s421
      %s441 = sphi 0, %s441
      %s443 = sphi 0, %s441
      %s444 = sphi 0, %s443
      %s458 = sphi 0, %s444
      %s462 = sphi 0, %s462
      %s464 = sphi 0, %s462
      %s465 = sphi 0, %s464
      %s479 = sphi 0, %s465
      %s485 = sphi 0, %s487
      %s488 = sphi 0, %s485
      %s489 = sphi 0, %s488
      %s505 = sphi 0, %s489
    $region4: #{forward.1} parent=1 // loop_header_branch
      %44 = sbr.rel (%p42) target = $region8
    $region5: #{forward.1} parent=1 // loop_body
      %s46 = ssub.s32 %s41, 1
      %s47 = ssub.s32 %s41, 2
      %s54 = sadd.s32 1, %s49
      %p55 = scmp.ge.s32.totalorder %s54, 3
      %s56 = scalar_select %p55, 0, %s54
      %s57 = sadd.s32 1, %s48
      %s58 = scalar_select %p55, %s57, %s48
      %p59 = scmp.ge.s32.totalorder %s58, 2
      %s60 = scalar_select %p59, 0, %s58
      %s61 = ssub.s32 %s48, %s60
      %p62 = scmp.eq.s32.totalorder %s61, 0
      %s64 = sadd.s32 %s63, 1
      %s65 = scalar_select %p62, %s63, %s64
      %p68 = pneg %p62
      %p69 = scmp.eq.s32.totalorder %s41, 5
      %p70 = por %p68, %p69
      %p71 = scmp.ne.s32.totalorder %s63, %s66
      %p72 = scmp.eq.s32.totalorder %s41, 0
      %p73 = por %p71, %p72
      %p74 = scmp.ne.s32.totalorder %s63, %s66
      %p75 = scmp.eq.s32.totalorder %s46, 5
      %p76 = por %p74, %p75
      %p77 = scmp.ne.s32.totalorder %s66, %s67
      %p78 = scmp.eq.s32.totalorder %s46, 0
      %p79 = por %p77, %p78
      %p80 = scmp.ne.s32.totalorder %s66, %s67
      %p81 = scmp.eq.s32.totalorder %s47, 5
      %p82 = por %p80, %p81
      %p84 = scmp.ne.s32.totalorder %s67, %s83
      %p85 = scmp.eq.s32.totalorder %s47, 0
      %p86 = por %p84, %p85
      %s88 = sadd.s32 %s87, 1
      %p91 = scmp.eq.s32.totalorder %s41, 5
      %p92 = scmp.ne.s32.totalorder %s87, %s89
      %p93 = scmp.eq.s32.totalorder %s41, 0
      %p94 = por %p92, %p93
      %p95 = scmp.ne.s32.totalorder %s87, %s89
      %p96 = scmp.eq.s32.totalorder %s46, 5
      %p97 = por %p95, %p96
      %p98 = scmp.ne.s32.totalorder %s89, %s90
      %p99 = scmp.eq.s32.totalorder %s46, 0
      %p100 = por %p98, %p99
      %p101 = scmp.ne.s32.totalorder %s89, %s90
      %p102 = scmp.eq.s32.totalorder %s47, 5
      %p103 = por %p101, %p102
      %p105 = scmp.ne.s32.totalorder %s90, %s104
      %p106 = scmp.eq.s32.totalorder %s47, 0
      %p107 = por %p105, %p106
      %s109 = sadd.s32 %s108, 1
      %p112 = scmp.eq.s32.totalorder %s41, 5
      %p113 = scmp.ne.s32.totalorder %s108, %s110
      %p114 = scmp.eq.s32.totalorder %s41, 0
      %p115 = por %p113, %p114
      %p116 = scmp.ne.s32.totalorder %s108, %s110
      %p117 = scmp.eq.s32.totalorder %s46, 5
      %p118 = por %p116, %p117
      %p119 = scmp.ne.s32.totalorder %s110, %s111
      %p120 = scmp.eq.s32.totalorder %s46, 0
      %p121 = por %p119, %p120
      %p122 = scmp.ne.s32.totalorder %s110, %s111
      %p123 = scmp.eq.s32.totalorder %s47, 5
      %p124 = por %p122, %p123
      %p126 = scmp.ne.s32.totalorder %s111, %s125
      %p127 = scmp.eq.s32.totalorder %s47, 0
      %p128 = por %p126, %p127
      %s129 = ssub.s32 %s49, %s56
      %p130 = scmp.eq.s32.totalorder %s129, 0
      %s132 = sadd.s32 %s131, 1
      %s133 = scalar_select %p130, %s131, %s132
      %p136 = pneg %p130
      %p137 = scmp.eq.s32.totalorder %s41, 5
      %p138 = por %p136, %p137
      %p139 = scmp.ne.s32.totalorder %s131, %s134
      %p140 = scmp.eq.s32.totalorder %s41, 0
      %p141 = por %p139, %p140
      %p142 = scmp.ne.s32.totalorder %s131, %s134
      %p143 = scmp.eq.s32.totalorder %s46, 5
      %p144 = por %p142, %p143
      %p145 = scmp.ne.s32.totalorder %s134, %s135
      %p146 = scmp.eq.s32.totalorder %s46, 0
      %p147 = por %p145, %p146
      %p148 = scmp.ne.s32.totalorder %s134, %s135
      %p149 = scmp.eq.s32.totalorder %s47, 5
      %p150 = por %p148, %p149
      %p152 = scmp.ne.s32.totalorder %s135, %s151
      %p153 = scmp.eq.s32.totalorder %s47, 0
      %p154 = por %p152, %p153
      %s155 = ssub.s32 %s49, %s56
      %p156 = scmp.eq.s32.totalorder %s155, 0
      %s158 = sadd.s32 %s157, 1
      %s159 = scalar_select %p156, %s157, %s158
      %p162 = pneg %p156
      %p163 = scmp.eq.s32.totalorder %s41, 5
      %p164 = por %p162, %p163
      %p165 = scmp.ne.s32.totalorder %s157, %s160
      %p166 = scmp.eq.s32.totalorder %s41, 0
      %p167 = por %p165, %p166
      %p168 = scmp.ne.s32.totalorder %s157, %s160
      %p169 = scmp.eq.s32.totalorder %s46, 5
      %p170 = por %p168, %p169
      %p171 = scmp.ne.s32.totalorder %s160, %s161
      %p172 = scmp.eq.s32.totalorder %s46, 0
      %p173 = por %p171, %p172
      %p174 = scmp.ne.s32.totalorder %s160, %s161
      %p175 = scmp.eq.s32.totalorder %s47, 5
      %p176 = por %p174, %p175
      %p178 = scmp.ne.s32.totalorder %s161, %s177
      %p179 = scmp.eq.s32.totalorder %s47, 0
      %p180 = por %p178, %p179
      %s181 = ssub.s32 %s49, %s56
      %p182 = scmp.eq.s32.totalorder %s181, 0
      %s184 = sadd.s32 %s183, 1
      %s185 = scalar_select %p182, %s183, %s184
      %p188 = pneg %p182
      %p189 = scmp.eq.s32.totalorder %s41, 5
      %p190 = por %p188, %p189
      %p191 = scmp.ne.s32.totalorder %s183, %s186
      %p192 = scmp.eq.s32.totalorder %s41, 0
      %p193 = por %p191, %p192
      %p194 = scmp.ne.s32.totalorder %s183, %s186
      %p195 = scmp.eq.s32.totalorder %s46, 5
      %p196 = por %p194, %p195
      %p197 = scmp.ne.s32.totalorder %s186, %s187
      %p198 = scmp.eq.s32.totalorder %s46, 0
      %p199 = por %p197, %p198
      %p200 = scmp.ne.s32.totalorder %s186, %s187
      %p201 = scmp.eq.s32.totalorder %s47, 5
      %p202 = por %p200, %p201
      %p204 = scmp.ne.s32.totalorder %s187, %s203
      %p205 = scmp.eq.s32.totalorder %s47, 0
      %p206 = por %p204, %p205
      %s207 = ssub.s32 %s49, %s56
      %p208 = scmp.eq.s32.totalorder %s207, 0
      %s210 = sadd.s32 %s209, 1
      %s211 = scalar_select %p208, %s209, %s210
      %p214 = pneg %p208
      %p215 = scmp.eq.s32.totalorder %s41, 5
      %p216 = por %p214, %p215
      %p217 = scmp.ne.s32.totalorder %s209, %s212
      %p218 = scmp.eq.s32.totalorder %s41, 0
      %p219 = por %p217, %p218
      %p220 = scmp.ne.s32.totalorder %s209, %s212
      %p221 = scmp.eq.s32.totalorder %s46, 5
      %p222 = por %p220, %p221
      %p223 = scmp.ne.s32.totalorder %s212, %s213
      %p224 = scmp.eq.s32.totalorder %s46, 0
      %p225 = por %p223, %p224
      %p226 = scmp.ne.s32.totalorder %s212, %s213
      %p227 = scmp.eq.s32.totalorder %s47, 5
      %p228 = por %p226, %p227
      %p230 = scmp.ne.s32.totalorder %s213, %s229
      %p231 = scmp.eq.s32.totalorder %s47, 0
      %p232 = por %p230, %p231
      %s233 = ssub.s32 %s49, %s56
      %p234 = scmp.eq.s32.totalorder %s233, 0
      %s236 = sadd.s32 %s235, 1
      %s237 = scalar_select %p234, %s235, %s236
      %p240 = pneg %p234
      %p241 = scmp.eq.s32.totalorder %s41, 5
      %p242 = por %p240, %p241
      %p243 = scmp.ne.s32.totalorder %s235, %s238
      %p244 = scmp.eq.s32.totalorder %s41, 0
      %p245 = por %p243, %p244
      %p246 = scmp.ne.s32.totalorder %s235, %s238
      %p247 = scmp.eq.s32.totalorder %s46, 5
      %p248 = por %p246, %p247
      %p249 = scmp.ne.s32.totalorder %s238, %s239
      %p250 = scmp.eq.s32.totalorder %s46, 0
      %p251 = por %p249, %p250
      %p252 = scmp.ne.s32.totalorder %s238, %s239
      %p253 = scmp.eq.s32.totalorder %s47, 5
      %p254 = por %p252, %p253
      %p256 = scmp.ne.s32.totalorder %s239, %s255
      %p257 = scmp.eq.s32.totalorder %s47, 0
      %p258 = por %p256, %p257
      %s259 = ssub.s32 %s49, %s56
      %p260 = scmp.eq.s32.totalorder %s259, 0
      %s262 = sadd.s32 %s261, 1
      %s263 = scalar_select %p260, %s261, %s262
      %p266 = pneg %p260
      %p267 = scmp.eq.s32.totalorder %s41, 5
      %p268 = por %p266, %p267
      %p269 = scmp.ne.s32.totalorder %s261, %s264
      %p270 = scmp.eq.s32.totalorder %s41, 0
      %p271 = por %p269, %p270
      %p272 = scmp.ne.s32.totalorder %s261, %s264
      %p273 = scmp.eq.s32.totalorder %s46, 5
      %p274 = por %p272, %p273
      %p275 = scmp.ne.s32.totalorder %s264, %s265
      %p276 = scmp.eq.s32.totalorder %s46, 0
      %p277 = por %p275, %p276
      %p278 = scmp.ne.s32.totalorder %s264, %s265
      %p279 = scmp.eq.s32.totalorder %s47, 5
      %p280 = por %p278, %p279
      %p282 = scmp.ne.s32.totalorder %s265, %s281
      %p283 = scmp.eq.s32.totalorder %s47, 0
      %p284 = por %p282, %p283
      %s285 = ssub.s32 %s49, %s56
      %p286 = scmp.eq.s32.totalorder %s285, 0
      %s288 = sadd.s32 %s287, 1
      %s289 = scalar_select %p286, %s287, %s288
      %p292 = pneg %p286
      %p293 = scmp.eq.s32.totalorder %s41, 5
      %p294 = por %p292, %p293
      %p295 = scmp.ne.s32.totalorder %s287, %s290
      %p296 = scmp.eq.s32.totalorder %s41, 0
      %p297 = por %p295, %p296
      %p298 = scmp.ne.s32.totalorder %s287, %s290
      %p299 = scmp.eq.s32.totalorder %s46, 5
      %p300 = por %p298, %p299
      %p301 = scmp.ne.s32.totalorder %s290, %s291
      %p302 = scmp.eq.s32.totalorder %s46, 0
      %p303 = por %p301, %p302
      %p304 = scmp.ne.s32.totalorder %s290, %s291
      %p305 = scmp.eq.s32.totalorder %s47, 5
      %p306 = por %p304, %p305
      %p308 = scmp.ne.s32.totalorder %s291, %s307
      %p309 = scmp.eq.s32.totalorder %s47, 0
      %p310 = por %p308, %p309
      %s311 = ssub.s32 %s49, %s56
      %p312 = scmp.eq.s32.totalorder %s311, 0
      %s314 = sadd.s32 %s313, 1
      %s315 = scalar_select %p312, %s313, %s314
      %p318 = pneg %p312
      %p319 = scmp.eq.s32.totalorder %s41, 5
      %p320 = por %p318, %p319
      %p321 = scmp.ne.s32.totalorder %s313, %s316
      %p322 = scmp.eq.s32.totalorder %s41, 0
      %p323 = por %p321, %p322
      %p324 = scmp.ne.s32.totalorder %s313, %s316
      %p325 = scmp.eq.s32.totalorder %s46, 5
      %p326 = por %p324, %p325
      %p327 = scmp.ne.s32.totalorder %s316, %s317
      %p328 = scmp.eq.s32.totalorder %s46, 0
      %p329 = por %p327, %p328
      %p330 = scmp.ne.s32.totalorder %s316, %s317
      %p331 = scmp.eq.s32.totalorder %s47, 5
      %p332 = por %p330, %p331
      %p334 = scmp.ne.s32.totalorder %s317, %s333
      %p335 = scmp.eq.s32.totalorder %s47, 0
      %p336 = por %p334, %p335
      %s337 = ssub.s32 %s49, %s56
      %p338 = scmp.eq.s32.totalorder %s337, 0
      %s340 = sadd.s32 %s339, 1
      %s341 = scalar_select %p338, %s339, %s340
      %p344 = pneg %p338
      %p345 = scmp.eq.s32.totalorder %s41, 5
      %p346 = por %p344, %p345
      %p347 = scmp.ne.s32.totalorder %s339, %s342
      %p348 = scmp.eq.s32.totalorder %s41, 0
      %p349 = por %p347, %p348
      %p350 = scmp.ne.s32.totalorder %s339, %s342
      %p351 = scmp.eq.s32.totalorder %s46, 5
      %p352 = por %p350, %p351
      %p353 = scmp.ne.s32.totalorder %s342, %s343
      %p354 = scmp.eq.s32.totalorder %s46, 0
      %p355 = por %p353, %p354
      %p356 = scmp.ne.s32.totalorder %s342, %s343
      %p357 = scmp.eq.s32.totalorder %s47, 5
      %p358 = por %p356, %p357
      %p360 = scmp.ne.s32.totalorder %s343, %s359
      %p361 = scmp.eq.s32.totalorder %s47, 0
      %p362 = por %p360, %p361
      %s363 = ssub.s32 %s49, %s56
      %p364 = scmp.eq.s32.totalorder %s363, 0
      %s366 = sadd.s32 %s365, 1
      %s367 = scalar_select %p364, %s365, %s366
      %p370 = pneg %p364
      %p371 = scmp.eq.s32.totalorder %s41, 5
      %p372 = por %p370, %p371
      %p373 = scmp.ne.s32.totalorder %s365, %s368
      %p374 = scmp.eq.s32.totalorder %s41, 0
      %p375 = por %p373, %p374
      %p376 = scmp.ne.s32.totalorder %s365, %s368
      %p377 = scmp.eq.s32.totalorder %s46, 5
      %p378 = por %p376, %p377
      %p379 = scmp.ne.s32.totalorder %s368, %s369
      %p380 = scmp.eq.s32.totalorder %s46, 0
      %p381 = por %p379, %p380
      %p382 = scmp.ne.s32.totalorder %s368, %s369
      %p383 = scmp.eq.s32.totalorder %s47, 5
      %p384 = por %p382, %p383
      %p386 = scmp.ne.s32.totalorder %s369, %s385
      %p387 = scmp.eq.s32.totalorder %s47, 0
      %p388 = por %p386, %p387
      %s389 = ssub.s32 %s49, %s56
      %p390 = scmp.eq.s32.totalorder %s389, 0
      %s392 = sadd.s32 %s391, 1
      %s393 = scalar_select %p390, %s391, %s392
      %p396 = pneg %p390
      %p397 = scmp.eq.s32.totalorder %s41, 5
      %p398 = por %p396, %p397
      %p399 = scmp.ne.s32.totalorder %s391, %s394
      %p400 = scmp.eq.s32.totalorder %s41, 0
      %p401 = por %p399, %p400
      %p402 = scmp.ne.s32.totalorder %s391, %s394
      %p403 = scmp.eq.s32.totalorder %s46, 5
      %p404 = por %p402, %p403
      %p405 = scmp.ne.s32.totalorder %s394, %s395
      %p406 = scmp.eq.s32.totalorder %s46, 0
      %p407 = por %p405, %p406
      %p408 = scmp.ne.s32.totalorder %s394, %s395
      %p409 = scmp.eq.s32.totalorder %s47, 5
      %p410 = por %p408, %p409
      %p412 = scmp.ne.s32.totalorder %s395, %s411
      %p413 = scmp.eq.s32.totalorder %s47, 0
      %p414 = por %p412, %p413
      %s415 = ssub.s32 %s49, %s56
      %p416 = scmp.eq.s32.totalorder %s415, 0
      %s418 = sadd.s32 %s417, 1
      %s419 = scalar_select %p416, %s417, %s418
      %p422 = pneg %p416
      %p423 = scmp.eq.s32.totalorder %s41, 5
      %p424 = por %p422, %p423
      %p425 = scmp.ne.s32.totalorder %s417, %s420
      %p426 = scmp.eq.s32.totalorder %s41, 0
      %p427 = por %p425, %p426
      %p428 = scmp.ne.s32.totalorder %s417, %s420
      %p429 = scmp.eq.s32.totalorder %s46, 5
      %p430 = por %p428, %p429
      %p431 = scmp.ne.s32.totalorder %s420, %s421
      %p432 = scmp.eq.s32.totalorder %s46, 0
      %p433 = por %p431, %p432
      %p434 = scmp.ne.s32.totalorder %s420, %s421
      %p435 = scmp.eq.s32.totalorder %s47, 5
      %p436 = por %p434, %p435
      %p438 = scmp.ne.s32.totalorder %s421, %s437
      %p439 = scmp.eq.s32.totalorder %s47, 0
      %p440 = por %p438, %p439
      %s442 = sadd.s32 %s441, 1
      %p445 = scmp.eq.s32.totalorder %s41, 5
      %p446 = scmp.ne.s32.totalorder %s441, %s443
      %p447 = scmp.eq.s32.totalorder %s41, 0
      %p448 = por %p446, %p447
      %p449 = scmp.ne.s32.totalorder %s441, %s443
      %p450 = scmp.eq.s32.totalorder %s46, 5
      %p451 = por %p449, %p450
      %p452 = scmp.ne.s32.totalorder %s443, %s444
      %p453 = scmp.eq.s32.totalorder %s46, 0
      %p454 = por %p452, %p453
      %p455 = scmp.ne.s32.totalorder %s443, %s444
      %p456 = scmp.eq.s32.totalorder %s47, 5
      %p457 = por %p455, %p456
      %p459 = scmp.ne.s32.totalorder %s444, %s458
      %p460 = scmp.eq.s32.totalorder %s47, 0
      %p461 = por %p459, %p460
      %s463 = sadd.s32 %s462, 1
      %p466 = scmp.eq.s32.totalorder %s41, 5
      %p467 = scmp.ne.s32.totalorder %s462, %s464
      %p468 = scmp.eq.s32.totalorder %s41, 0
      %p469 = por %p467, %p468
      %p470 = scmp.ne.s32.totalorder %s462, %s464
      %p471 = scmp.eq.s32.totalorder %s46, 5
      %p472 = por %p470, %p471
      %p473 = scmp.ne.s32.totalorder %s464, %s465
      %p474 = scmp.eq.s32.totalorder %s46, 0
      %p475 = por %p473, %p474
      %p476 = scmp.ne.s32.totalorder %s464, %s465
      %p477 = scmp.eq.s32.totalorder %s47, 5
      %p478 = por %p476, %p477
      %p480 = scmp.ne.s32.totalorder %s465, %s479
      %p481 = scmp.eq.s32.totalorder %s47, 0
      %p482 = por %p480, %p481
      %s483 = ssub.s32 %s48, %s60
      %p484 = scmp.eq.s32.totalorder %s483, 0
      %s486 = sadd.s32 %s485, 1
      %s487 = scalar_select %p484, %s485, %s486
      %p490 = pneg %p484
      %p491 = scmp.eq.s32.totalorder %s41, 5
      %p492 = por %p490, %p491
      %p493 = scmp.ne.s32.totalorder %s485, %s488
      %p494 = scmp.eq.s32.totalorder %s41, 0
      %p495 = por %p493, %p494
      %p496 = scmp.ne.s32.totalorder %s485, %s488
      %p497 = scmp.eq.s32.totalorder %s46, 5
      %p498 = por %p496, %p497
      %p499 = scmp.ne.s32.totalorder %s488, %s489
      %p500 = scmp.eq.s32.totalorder %s46, 0
      %p501 = por %p499, %p500
      %p502 = scmp.ne.s32.totalorder %s488, %s489
      %p503 = scmp.eq.s32.totalorder %s47, 5
      %p504 = por %p502, %p503
      %p506 = scmp.ne.s32.totalorder %s489, %s505
      %p507 = scmp.eq.s32.totalorder %s47, 0
      %p508 = por %p506, %p507
      %p509 = scmp.le.s32.totalorder 1, %s41
      %p510 = scmp.lt.s32.totalorder %s41, 7
      %p511 = pnand %p509, %p510
      %p512 = pneg %p511
      // Predicated region
      $region9: #{forward.1} parent=5 // pred_check
        _
      $region10: #{forward.1} parent=5 // pred_check_branch
        %514 = sbr.rel (%p511) target = $region12
      $region11: #{forward.1} parent=5 // pred_region
        %s515 = ssub.s32 %s41, 1
        // Predicated region
        $region13: #{forward.1} parent=11 // pred_check
          %p516 = pneg %p100
        $region14: #{forward.1} parent=11 // pred_check_branch
          %518 = sbr.rel (%p516) target = $region16
        $region15: #{forward.1} parent=11 // pred_region
          _
        $region16: #{forward.1} parent=11 // pred_fallthru
          _
        // Predicated region
        $region17: #{forward.1} parent=11 // pred_check
          %p519 = pneg %p121
        $region18: #{forward.1} parent=11 // pred_check_branch
          %521 = sbr.rel (%p519) target = $region20
        $region19: #{forward.1} parent=11 // pred_region
          _
        $region20: #{forward.1} parent=11 // pred_fallthru
          _
        // Predicated region
        $region21: #{forward.1} parent=11 // pred_check
          %p522 = pneg %p454
        $region22: #{forward.1} parent=11 // pred_check_branch
          %524 = sbr.rel (%p522) target = $region24
        $region23: #{forward.1} parent=11 // pred_region
          %526 = vsyncadd [#allocation16], 0
          %s527 = sshll.u32 %s15, 4
          %s528 = int_to_ptr.hbm [resolvable:$true] %s527
          %s529 = sshll.u32 [#allocation17], 4
          %s530 = int_to_ptr.vmem [resolvable:$true] %s529
          %535 = dma.hbm_to_vmem [thread:$0]  %s528, 1024, %s530, [#allocation16], 64, 64, 4
        $region24: #{forward.1} parent=11 // pred_fallthru
          _
        // Predicated region
        $region25: #{forward.1} parent=11 // pred_check
          %p536 = pneg %p475
        $region26: #{forward.1} parent=11 // pred_check_branch
          %538 = sbr.rel (%p536) target = $region28
        $region27: #{forward.1} parent=11 // pred_region
          _
        $region28: #{forward.1} parent=11 // pred_fallthru
          _
      $region12: #{forward.1} parent=5 // pred_fallthru
        _
      %p539 = scmp.lt.s32.totalorder %s41, 6
      // Predicated region
      $region29: #{forward.1} parent=5 // pred_check
        %p540 = pneg %p539
      $region30: #{forward.1} parent=5 // pred_check_branch
        %542 = sbr.rel (%p540) target = $region32
      $region31: #{forward.1} parent=5 // pred_region
        // Predicated region
        $region33: #{forward.1} parent=31 // pred_check
          %p543 = pneg %p73
        $region34: #{forward.1} parent=31 // pred_check_branch
          %545 = sbr.rel (%p543) target = $region36
        $region35: #{forward.1} parent=31 // pred_region
          %s546 = sand.u32 %s63, 1
          %s547 = scalar_lea.sflag [#allocation4], %s546
          %s548 = sand.u32 %s63, 1
          %s549 = smul.addr %s548, 16
          %s550 = scalar_lea.vmem [#allocation3], %s549
          %552 = vsyncadd %s547, 0
          %s553 = smul.addr %s48, 2
          %s554 = smul.addr %s553, 8
          %s555 = scalar_lea.hbm %s0, %s554
          %s556 = sshll.u32 %s555, 4
          %s557 = int_to_ptr.hbm [resolvable:$true] %s556
          %s558 = sshll.u32 %s550, 4
          %s559 = int_to_ptr.vmem [resolvable:$true] %s558
          %564 = dma.hbm_to_vmem [thread:$0]  %s557, 256, %s559, %s547, 128, 128, 8
        $region36: #{forward.1} parent=31 // pred_fallthru
          _
        // Predicated region
        $region37: #{forward.1} parent=31 // pred_check
          %p565 = pneg %p141
        $region38: #{forward.1} parent=31 // pred_check_branch
          %567 = sbr.rel (%p565) target = $region40
        $region39: #{forward.1} parent=31 // pred_region
          %p568 = scmp.lt.s32.totalorder %s49, 2
          %s569 = scalar_select %p568, %s49, 2
          %s570 = scalar_lea.vmem %s3, %s569
        $region40: #{forward.1} parent=31 // pred_fallthru
          _
        // Predicated region
        $region41: #{forward.1} parent=31 // pred_check
          %p571 = pneg %p167
        $region42: #{forward.1} parent=31 // pred_check_branch
          %573 = sbr.rel (%p571) target = $region44
        $region43: #{forward.1} parent=31 // pred_region
          %p574 = scmp.lt.s32.totalorder %s49, 2
          %s575 = scalar_select %p574, %s49, 2
          %s576 = scalar_lea.vmem %s4, %s575
        $region44: #{forward.1} parent=31 // pred_fallthru
          _
        // Predicated region
        $region45: #{forward.1} parent=31 // pred_check
          %p577 = pneg %p193
        $region46: #{forward.1} parent=31 // pred_check_branch
          %579 = sbr.rel (%p577) target = $region48
        $region47: #{forward.1} parent=31 // pred_region
          %s580 = sand.u32 %s41, 1
          %s581 = scalar_lea.sflag [#allocation7], %s580
          %s582 = sand.u32 %s183, 1
          %s583 = smul.addr %s582, 192
          %s584 = scalar_lea.vmem [#allocation6], %s583
          %586 = vsyncadd %s581, 0
          %s587 = smul.addr %s49, 48
          %s588 = smul.addr %s587, 4
          %s589 = scalar_lea.hbm %s5, %s588
          %s590 = sshll.u32 %s589, 4
          %s591 = int_to_ptr.hbm [resolvable:$true] %s590
          %s592 = sshll.u32 %s584, 4
          %s593 = int_to_ptr.vmem [resolvable:$true] %s592
          %598 = dma.hbm_to_vmem [thread:$0]  %s591, 3072, %s593, %s581, 192, 192, 12
        $region48: #{forward.1} parent=31 // pred_fallthru
          _
        // Predicated region
        $region49: #{forward.1} parent=31 // pred_check
          %p599 = pneg %p219
        $region50: #{forward.1} parent=31 // pred_check_branch
          %601 = sbr.rel (%p599) target = $region52
        $region51: #{forward.1} parent=31 // pred_region
          %s602 = sand.u32 %s41, 1
          %s603 = scalar_lea.sflag [#allocation7], %s602
          %s604 = sand.u32 %s209, 1
          %s605 = smul.addr %s604, 3
          %s606 = scalar_lea.vmem [#allocation8], %s605
          %608 = vsyncadd %s603, 0
          %s609 = smul.addr %s49, 3
          %s610 = scalar_lea.hbm %s6, %s609
          %s612 = sshll.u32 %s610, 4
          %s613 = int_to_ptr.hbm [resolvable:$true] %s612
          %s614 = sshll.u32 %s606, 4
          %s615 = int_to_ptr.vmem [resolvable:$true] %s614
          %617 = dma.hbm_to_vmem [thread:$0]  %s613, 48, %s615, %s603
        $region52: #{forward.1} parent=31 // pred_fallthru
          _
        // Predicated region
        $region53: #{forward.1} parent=31 // pred_check
          %p618 = pneg %p245
        $region54: #{forward.1} parent=31 // pred_check_branch
          %620 = sbr.rel (%p618) target = $region56
        $region55: #{forward.1} parent=31 // pred_region
          %s621 = sand.u32 %s41, 1
          %s622 = scalar_lea.sflag [#allocation10], %s621
          %s623 = sand.u32 %s235, 1
          %s624 = smul.addr %s623, 64
          %s625 = scalar_lea.vmem [#allocation9], %s624
          %627 = vsyncadd %s622, 0
          %s628 = smul.addr %s49, 16
          %s629 = smul.addr %s628, 4
          %s630 = scalar_lea.hbm %s7, %s629
          %s631 = sshll.u32 %s630, 4
          %s632 = int_to_ptr.hbm [resolvable:$true] %s631
          %s633 = sshll.u32 %s625, 4
          %s634 = int_to_ptr.vmem [resolvable:$true] %s633
          %639 = dma.hbm_to_vmem [thread:$0]  %s632, 1024, %s634, %s622, 64, 64, 4
        $region56: #{forward.1} parent=31 // pred_fallthru
          _
        // Predicated region
        $region57: #{forward.1} parent=31 // pred_check
          %p640 = pneg %p271
        $region58: #{forward.1} parent=31 // pred_check_branch
          %642 = sbr.rel (%p640) target = $region60
        $region59: #{forward.1} parent=31 // pred_region
          %s643 = sand.u32 %s41, 1
          %s644 = scalar_lea.sflag [#allocation10], %s643
          %s645 = sand.u32 %s261, 1
          %s646 = scalar_lea.vmem [#allocation11], %s645
          %648 = vsyncadd %s644, 0
          %s649 = scalar_lea.hbm %s8, %s49
          %s651 = sshll.u32 %s649, 4
          %s652 = int_to_ptr.hbm [resolvable:$true] %s651
          %s653 = sshll.u32 %s646, 4
          %s654 = int_to_ptr.vmem [resolvable:$true] %s653
          %656 = dma.hbm_to_vmem [thread:$0]  %s652, 16, %s654, %s644
        $region60: #{forward.1} parent=31 // pred_fallthru
          _
        // Predicated region
        $region61: #{forward.1} parent=31 // pred_check
          %p657 = pneg %p297
        $region62: #{forward.1} parent=31 // pred_check_branch
          %659 = sbr.rel (%p657) target = $region64
        $region63: #{forward.1} parent=31 // pred_region
          %p660 = scmp.lt.s32.totalorder %s49, 2
          %s661 = scalar_select %p660, %s49, 2
          %s662 = scalar_lea.vmem %s9, %s661
        $region64: #{forward.1} parent=31 // pred_fallthru
          _
        // Predicated region
        $region65: #{forward.1} parent=31 // pred_check
          %p663 = pneg %p323
        $region66: #{forward.1} parent=31 // pred_check_branch
          %665 = sbr.rel (%p663) target = $region68
        $region67: #{forward.1} parent=31 // pred_region
          %p666 = scmp.lt.s32.totalorder %s49, 2
          %s667 = scalar_select %p666, %s49, 2
          %s668 = scalar_lea.vmem %s10, %s667
        $region68: #{forward.1} parent=31 // pred_fallthru
          _
        // Predicated region
        $region69: #{forward.1} parent=31 // pred_check
          %p669 = pneg %p349
        $region70: #{forward.1} parent=31 // pred_check_branch
          %671 = sbr.rel (%p669) target = $region72
        $region71: #{forward.1} parent=31 // pred_region
          %s672 = sand.u32 %s41, 1
          %s673 = scalar_lea.sflag [#allocation13], %s672
          %s674 = sand.u32 %s339, 1
          %s675 = smul.addr %s674, 256
          %s676 = scalar_lea.vmem [#allocation12], %s675
          %678 = vsyncadd %s673, 0
          %s679 = smul.addr %s49, 64
          %s680 = smul.addr %s679, 4
          %s681 = scalar_lea.hbm %s11, %s680
          %s682 = sshll.u32 %s681, 4
          %s683 = int_to_ptr.hbm [resolvable:$true] %s682
          %s684 = sshll.u32 %s676, 4
          %s685 = int_to_ptr.vmem [resolvable:$true] %s684
          %690 = dma.hbm_to_vmem [thread:$0]  %s683, 4096, %s685, %s673, 256, 256, 16
        $region72: #{forward.1} parent=31 // pred_fallthru
          _
        // Predicated region
        $region73: #{forward.1} parent=31 // pred_check
          %p691 = pneg %p375
        $region74: #{forward.1} parent=31 // pred_check_branch
          %693 = sbr.rel (%p691) target = $region76
        $region75: #{forward.1} parent=31 // pred_region
          %p694 = scmp.lt.s32.totalorder %s49, 2
          %s695 = scalar_select %p694, %s49, 2
          %s696 = smul.addr %s695, 4
          %s697 = scalar_lea.vmem %s12, %s696
        $region76: #{forward.1} parent=31 // pred_fallthru
          _
        // Predicated region
        $region77: #{forward.1} parent=31 // pred_check
          %p698 = pneg %p401
        $region78: #{forward.1} parent=31 // pred_check_branch
          %700 = sbr.rel (%p698) target = $region80
        $region79: #{forward.1} parent=31 // pred_region
          %s701 = sand.u32 %s41, 1
          %s702 = scalar_lea.sflag [#allocation13], %s701
          %s703 = sand.u32 %s391, 1
          %s704 = smul.addr %s703, 256
          %s705 = scalar_lea.vmem [#allocation14], %s704
          %707 = vsyncadd %s702, 0
          %s708 = smul.addr %s49, 64
          %s709 = smul.addr %s708, 4
          %s710 = scalar_lea.hbm %s13, %s709
          %s711 = sshll.u32 %s710, 4
          %s712 = int_to_ptr.hbm [resolvable:$true] %s711
          %s713 = sshll.u32 %s705, 4
          %s714 = int_to_ptr.vmem [resolvable:$true] %s713
          %719 = dma.hbm_to_vmem [thread:$0]  %s712, 4096, %s714, %s702, 64, 64, 4
        $region80: #{forward.1} parent=31 // pred_fallthru
          _
        // Predicated region
        $region81: #{forward.1} parent=31 // pred_check
          %p720 = pneg %p427
        $region82: #{forward.1} parent=31 // pred_check_branch
          %722 = sbr.rel (%p720) target = $region84
        $region83: #{forward.1} parent=31 // pred_region
          %s723 = sand.u32 %s41, 1
          %s724 = scalar_lea.sflag [#allocation16], %s723
          %s725 = sand.u32 %s417, 1
          %s726 = scalar_lea.vmem [#allocation15], %s725
          %728 = vsyncadd %s724, 0
          %s729 = scalar_lea.hbm %s14, %s49
          %s731 = sshll.u32 %s729, 4
          %s732 = int_to_ptr.hbm [resolvable:$true] %s731
          %s733 = sshll.u32 %s726, 4
          %s734 = int_to_ptr.vmem [resolvable:$true] %s733
          %736 = dma.hbm_to_vmem [thread:$0]  %s732, 16, %s734, %s724
        $region84: #{forward.1} parent=31 // pred_fallthru
          _
      $region32: #{forward.1} parent=5 // pred_fallthru
        _
      %p737 = scmp.le.s32.totalorder 1, %s41
      %p738 = scmp.lt.s32.totalorder %s41, 7
      %p739 = pnand %p737, %p738
      %p740 = pneg %p739
      // Predicated region
      $region85: #{forward.1} parent=5 // pred_check
        _
      $region86: #{forward.1} parent=5 // pred_check_branch
        %742 = sbr.rel (%p739) target = $region88
      $region87: #{forward.1} parent=5 // pred_region
        %s743 = ssub.s32 %s41, 1
        %s744 = sand.u32 %s66, 1
        %s745 = scalar_lea.sflag [#allocation4], %s744
        %s746 = sand.u32 %s66, 1
        %s747 = smul.addr %s746, 16
        %s748 = scalar_lea.vmem [#allocation3], %s747
        // Predicated region
        $region89: #{forward.1} parent=87 // pred_check
          %p749 = pneg %p79
        $region90: #{forward.1} parent=87 // pred_check_branch
          %751 = sbr.rel (%p749) target = $region92
        $region91: #{forward.1} parent=87 // pred_region
          %753 = dma.done %s745, 256
        $region92: #{forward.1} parent=87 // pred_fallthru
          _
        %s754 = sand.u32 %s46, 1
        %s755 = scalar_lea.sflag [#allocation7], %s754
        %s756 = sand.u32 %s186, 1
        %s757 = smul.addr %s756, 192
        %s758 = scalar_lea.vmem [#allocation6], %s757
        // Predicated region
        $region93: #{forward.1} parent=87 // pred_check
          %p759 = pneg %p199
        $region94: #{forward.1} parent=87 // pred_check_branch
          %761 = sbr.rel (%p759) target = $region96
        $region95: #{forward.1} parent=87 // pred_region
          %763 = dma.done %s755, 3072
        $region96: #{forward.1} parent=87 // pred_fallthru
          _
        %s764 = sand.u32 %s46, 1
        %s765 = scalar_lea.sflag [#allocation7], %s764
        %s766 = sand.u32 %s212, 1
        %s767 = smul.addr %s766, 3
        %s768 = scalar_lea.vmem [#allocation8], %s767
        // Predicated region
        $region97: #{forward.1} parent=87 // pred_check
          %p769 = pneg %p225
        $region98: #{forward.1} parent=87 // pred_check_branch
          %771 = sbr.rel (%p769) target = $region100
        $region99: #{forward.1} parent=87 // pred_region
          %773 = dma.done %s765, 48
        $region100: #{forward.1} parent=87 // pred_fallthru
          _
        %s774 = sand.u32 %s46, 1
        %s775 = scalar_lea.sflag [#allocation10], %s774
        %s776 = sand.u32 %s238, 1
        %s777 = smul.addr %s776, 64
        %s778 = scalar_lea.vmem [#allocation9], %s777
        // Predicated region
        $region101: #{forward.1} parent=87 // pred_check
          %p779 = pneg %p251
        $region102: #{forward.1} parent=87 // pred_check_branch
          %781 = sbr.rel (%p779) target = $region104
        $region103: #{forward.1} parent=87 // pred_region
          %783 = dma.done %s775, 1024
        $region104: #{forward.1} parent=87 // pred_fallthru
          _
        %s784 = sand.u32 %s46, 1
        %s785 = scalar_lea.sflag [#allocation10], %s784
        %s786 = sand.u32 %s264, 1
        %s787 = scalar_lea.vmem [#allocation11], %s786
        // Predicated region
        $region105: #{forward.1} parent=87 // pred_check
          %p788 = pneg %p277
        $region106: #{forward.1} parent=87 // pred_check_branch
          %790 = sbr.rel (%p788) target = $region108
        $region107: #{forward.1} parent=87 // pred_region
          %792 = dma.done %s785, 16
        $region108: #{forward.1} parent=87 // pred_fallthru
          _
        %s793 = sand.u32 %s46, 1
        %s794 = scalar_lea.sflag [#allocation13], %s793
        %s795 = sand.u32 %s342, 1
        %s796 = smul.addr %s795, 256
        %s797 = scalar_lea.vmem [#allocation12], %s796
        // Predicated region
        $region109: #{forward.1} parent=87 // pred_check
          %p798 = pneg %p355
        $region110: #{forward.1} parent=87 // pred_check_branch
          %800 = sbr.rel (%p798) target = $region112
        $region111: #{forward.1} parent=87 // pred_region
          %802 = dma.done %s794, 4096
        $region112: #{forward.1} parent=87 // pred_fallthru
          _
        %s803 = sand.u32 %s46, 1
        %s804 = scalar_lea.sflag [#allocation13], %s803
        %s805 = sand.u32 %s394, 1
        %s806 = smul.addr %s805, 256
        %s807 = scalar_lea.vmem [#allocation14], %s806
        // Predicated region
        $region113: #{forward.1} parent=87 // pred_check
          %p808 = pneg %p407
        $region114: #{forward.1} parent=87 // pred_check_branch
          %810 = sbr.rel (%p808) target = $region116
        $region115: #{forward.1} parent=87 // pred_region
          %812 = dma.done %s804, 4096
        $region116: #{forward.1} parent=87 // pred_fallthru
          _
        %s813 = sand.u32 %s46, 1
        %s814 = scalar_lea.sflag [#allocation16], %s813
        %s815 = sand.u32 %s420, 1
        %s816 = scalar_lea.vmem [#allocation15], %s815
        // Predicated region
        $region117: #{forward.1} parent=87 // pred_check
          %p817 = pneg %p433
        $region118: #{forward.1} parent=87 // pred_check_branch
          %819 = sbr.rel (%p817) target = $region120
        $region119: #{forward.1} parent=87 // pred_region
          %821 = dma.done %s814, 16
        $region120: #{forward.1} parent=87 // pred_fallthru
          _
        // Predicated region
        $region121: #{forward.1} parent=87 // pred_check
          %p822 = pneg %p454
        $region122: #{forward.1} parent=87 // pred_check_branch
          %824 = sbr.rel (%p822) target = $region124
        $region123: #{forward.1} parent=87 // pred_region
          %826 = dma.done [#allocation16], 1024
        $region124: #{forward.1} parent=87 // pred_fallthru
          _
        %s827 = sand.u32 %s66, 1
        %s828 = scalar_lea.sflag [#allocation4], %s827
        %s829 = sand.u32 %s66, 1
        %s830 = smul.addr %s829, 16
        %s831 = scalar_lea.vmem [#allocation3], %s830
        %p832 = pneg %p79
        %p833 = pneg %p76
        %p834 = pneg %p100
        %p835 = pneg %p97
        %p836 = pneg %p121
        %p837 = pneg %p118
        %p838 = scmp.lt.s32.totalorder %s51, 2
        %s839 = scalar_select %p838, %s51, 2
        %s840 = scalar_lea.vmem %s3, %s839
        %p841 = pneg %p147
        %p842 = pneg %p144
        %p843 = scmp.lt.s32.totalorder %s51, 2
        %s844 = scalar_select %p843, %s51, 2
        %s845 = scalar_lea.vmem %s4, %s844
        %p846 = pneg %p173
        %p847 = pneg %p170
        %s848 = sand.u32 %s46, 1
        %s849 = scalar_lea.sflag [#allocation7], %s848
        %s850 = sand.u32 %s186, 1
        %s851 = smul.addr %s850, 192
        %s852 = scalar_lea.vmem [#allocation6], %s851
        %p853 = pneg %p199
        %p854 = pneg %p196
        %s855 = sand.u32 %s46, 1
        %s856 = scalar_lea.sflag [#allocation7], %s855
        %s857 = sand.u32 %s212, 1
        %s858 = smul.addr %s857, 3
        %s859 = scalar_lea.vmem [#allocation8], %s858
        %p860 = pneg %p225
        %p861 = pneg %p222
        %s862 = sand.u32 %s46, 1
        %s863 = scalar_lea.sflag [#allocation10], %s862
        %s864 = sand.u32 %s238, 1
        %s865 = smul.addr %s864, 64
        %s866 = scalar_lea.vmem [#allocation9], %s865
        %p867 = pneg %p251
        %p868 = pneg %p248
        %s869 = sand.u32 %s46, 1
        %s870 = scalar_lea.sflag [#allocation10], %s869
        %s871 = sand.u32 %s264, 1
        %s872 = scalar_lea.vmem [#allocation11], %s871
        %p873 = pneg %p277
        %p874 = pneg %p274
        %p875 = scmp.lt.s32.totalorder %s51, 2
        %s876 = scalar_select %p875, %s51, 2
        %s877 = scalar_lea.vmem %s9, %s876
        %p878 = pneg %p303
        %p879 = pneg %p300
        %p880 = scmp.lt.s32.totalorder %s51, 2
        %s881 = scalar_select %p880, %s51, 2
        %s882 = scalar_lea.vmem %s10, %s881
        %p883 = pneg %p329
        %p884 = pneg %p326
        %s885 = sand.u32 %s46, 1
        %s886 = scalar_lea.sflag [#allocation13], %s885
        %s887 = sand.u32 %s342, 1
        %s888 = smul.addr %s887, 256
        %s889 = scalar_lea.vmem [#allocation12], %s888
        %p890 = pneg %p355
        %p891 = pneg %p352
        %p892 = scmp.lt.s32.totalorder %s51, 2
        %s893 = scalar_select %p892, %s51, 2
        %s894 = smul.addr %s893, 4
        %s895 = scalar_lea.vmem %s12, %s894
        %p896 = pneg %p381
        %p897 = pneg %p378
        %s898 = sand.u32 %s46, 1
        %s899 = scalar_lea.sflag [#allocation13], %s898
        %s900 = sand.u32 %s394, 1
        %s901 = smul.addr %s900, 256
        %s902 = scalar_lea.vmem [#allocation14], %s901
        %p903 = pneg %p407
        %p904 = pneg %p404
        %s905 = sand.u32 %s46, 1
        %s906 = scalar_lea.sflag [#allocation16], %s905
        %s907 = sand.u32 %s420, 1
        %s908 = scalar_lea.vmem [#allocation15], %s907
        %p909 = pneg %p433
        %p910 = pneg %p430
        %p911 = pneg %p454
        %p912 = pneg %p451
        %p913 = pneg %p475
        %p914 = pneg %p472
        %p915 = pneg %p501
        %p916 = pneg %p498
        %s917 = sand.u32 %s488, 1
        %s918 = scalar_lea.sflag [#allocation5], %s917
        %s919 = sand.u32 %s488, 1
        %s920 = scalar_lea.vmem [#allocation18], %s919
        %p921 = scmp.lt.s32.totalorder %s51, 2
        %s922 = scalar_select %p921, %s51, 2
        %s923 = scalar_lea.vmem %s3, %s922
        %p924 = scmp.lt.s32.totalorder %s51, 2
        %s925 = scalar_select %p924, %s51, 2
        %s926 = scalar_lea.vmem %s4, %s925
        %p927 = scmp.lt.s32.totalorder %s51, 2
        %s928 = scalar_select %p927, %s51, 2
        %s929 = scalar_lea.vmem %s9, %s928
        %p930 = scmp.lt.s32.totalorder %s51, 2
        %s931 = scalar_select %p930, %s51, 2
        %s932 = scalar_lea.vmem %s10, %s931
        %p933 = scmp.lt.s32.totalorder %s51, 2
        %s934 = scalar_select %p933, %s51, 2
        %s935 = smul.addr %s934, 4
        %s936 = scalar_lea.vmem %s12, %s935
        %p938 = scmp.eq.s32.totalorder %s51, 0
        // Predicated region
        $region125: #{forward.1} parent=87 // pred_check
          %p939 = pneg %p938
        $region126: #{forward.1} parent=87 // pred_check_branch
          %941 = sbr.rel (%p939) target = $region128
        $region127: #{forward.1} parent=87 // pred_region
          %v942 = vld [vmem:[%s1] sm:$0x1]
          %v943 = vld [vmem:[%s748] sm:$0xff]
          %v944 = vld [vmem:[%s748 + $0x8] sm:$0xff]
          %v945 = vld [vmem:[%s2] sm:$0xff]
          %v946 = vld [vmem:[%s2 + $0x8] sm:$0xff]
          %v947 = vadd.f32 %v943, %v945
          %v948 = vadd.f32 %v944, %v946
          %vm951 = vcmask 1040384
          %v952 = vrot.slane %v947, 7
          %v953 = vrot.slane %v948, 7
          %v954 = vsel %vm951, %v952, %v953
          %v958 = vsel %vm951, %v942, %v952
          %959 = vst [vmem:[#allocation2] sm:$0xff] %v958
          %960 = vst [vmem:[#allocation2 + $0x8] sm:$0xff] %v954
          %961 = vst [vmem:[#allocation2 + $0x10] sm:$0x1] %v953
        $region128: #{forward.1} parent=87 // pred_fallthru
          _
        %v962 = vld [vmem:[#allocation2] sm:$0xff]
        %v963 = vld [vmem:[#allocation2 + $0x8] sm:$0xff]
        %v964 = vld [vmem:[#allocation2 + $0x10] sm:$0x1]
        %v965 = vld [vmem:[%s923] sm:$0x1]
        %v966 = vld [vmem:[%s926] sm:$0x1]
        %967 = vadd.xlane.f32.xlu0 %v962
        %v968 = vpop.xlane.xlu0 %967
        %969 = vadd.xlane.f32.xlu0 %v963
        %v970 = vpop.xlane.xlu0 %969
        %vm971 = vcmask 1040384
        %v972 = vsel %vm971, %v964, 0.0
        %973 = vadd.xlane.f32.xlu0 %v972
        %v974 = vpop.xlane.xlu0 %973
        %v975 = vrcp.pop 128.0
        %v976 = vmul.f32 128.0, %v975
        %v977 = vsub.f32 1.0, %v976
        %v978 = vmul.f32 %v975, %v977
        %v979 = vadd.f32 %v975, %v978
        %vm980 = vweird.f32 %v975
        %v981 = vsel %vm980, %v975, %v979
        %v982 = vmul.f32 %v968, %v981
        %v983 = vmul.f32 %v970, %v981
        %v984 = vmul.f32 %v974, %v981
        %v985 = vsub.f32 %v962, %v982
        %v986 = vsub.f32 %v963, %v983
        %v987 = vsub.f32 %v964, %v984
        %v988 = vmul.f32 %v985, %v985
        %v989 = vmul.f32 %v986, %v986
        %v990 = vmul.f32 %v987, %v987
        %991 = vadd.xlane.f32.xlu0 %v988
        %v992 = vpop.xlane.xlu0 %991
        %993 = vadd.xlane.f32.xlu0 %v989
        %v994 = vpop.xlane.xlu0 %993
        %v995 = vsel %vm971, %v990, 0.0
        %996 = vadd.xlane.f32.xlu0 %v995
        %v997 = vpop.xlane.xlu0 %996
        %v998 = vmul.f32 %v992, %v981
        %v999 = vmul.f32 %v994, %v981
        %v1000 = vmul.f32 %v997, %v981
        %v1001 = vadd.f32 %v998, 1e-05
        %v1002 = vadd.f32 %v999, 1e-05
        %v1003 = vadd.f32 %v1000, 1e-05
        %v1004 = vrsqrt.pop %v1001
        %v1005 = vmul.f32 %v1004, %v1001
        %v1006 = vmul.f32 %v1005, %v1004
        %v1007 = vmul.f32 0.5, %v1006
        %v1008 = vsub.f32 1.5, %v1007
        %v1009 = vmul.f32 %v1004, %v1008
        %vm1010 = vweird.f32 %v1001
        %vm1011 = vweird.f32 %v1004
        %vm1012 = vmor %vm1010, %vm1011
        %v1013 = vsel %vm1012, %v1004, %v1009
        %v1014 = vrsqrt.pop %v1002
        %v1015 = vmul.f32 %v1014, %v1002
        %v1016 = vmul.f32 %v1015, %v1014
        %v1017 = vmul.f32 0.5, %v1016
        %v1018 = vsub.f32 1.5, %v1017
        %v1019 = vmul.f32 %v1014, %v1018
        %vm1020 = vweird.f32 %v1002
        %vm1021 = vweird.f32 %v1014
        %vm1022 = vmor %vm1020, %vm1021
        %v1023 = vsel %vm1022, %v1014, %v1019
        %v1024 = vrsqrt.pop %v1003
        %v1025 = vmul.f32 %v1024, %v1003
        %v1026 = vmul.f32 %v1025, %v1024
        %v1027 = vmul.f32 0.5, %v1026
        %v1028 = vsub.f32 1.5, %v1027
        %v1029 = vmul.f32 %v1024, %v1028
        %vm1030 = vweird.f32 %v1003
        %vm1031 = vweird.f32 %v1024
        %vm1032 = vmor %vm1030, %vm1031
        %v1033 = vsel %vm1032, %v1024, %v1029
        %v1034 = vmul.f32 %v985, %v1013
        %v1035 = vmul.f32 %v986, %v1023
        %v1036 = vmul.f32 %v987, %v1033
        %v1038 = vperm.slane %v965, 0
        %v1040 = vmul.f32 %v1034, %v1038
        %v1041 = vmul.f32 %v1035, %v1038
        %v1042 = vmul.f32 %v1036, %v1038
        %v1044 = vperm.slane %v966, 0
        %v1046 = vadd.f32 %v1040, %v1044
        %v1047 = vadd.f32 %v1041, %v1044
        %v1048 = vadd.f32 %v1042, %v1044
        %v1049 = vpack.c.bf16 %v1047, %v1046
        %v1050 = vpack.c.bf16 %v1048, %v1048
        %v1051 = vld [vmem:[%s758] sm:$0xff]
        %v1052 = vld [vmem:[%s758 + $0x8] sm:$0xf]
        %v1053 = vld [vmem:[%s758 + $0xc] sm:$0xff]
        %v1054 = vld [vmem:[%s758 + $0x14] sm:$0xf]
        %v1055 = vld [vmem:[%s758 + $0x18] sm:$0xff]
        %v1056 = vld [vmem:[%s758 + $0x20] sm:$0xf]
        %v1057 = vld [vmem:[%s758 + $0x24] sm:$0xff]
        %v1058 = vld [vmem:[%s758 + $0x2c] sm:$0xf]
        %v1059 = vld [vmem:[%s758 + $0x30] sm:$0xff]
        %v1060 = vld [vmem:[%s758 + $0x38] sm:$0xf]
        %v1061 = vld [vmem:[%s758 + $0x3c] sm:$0xff]
        %v1062 = vld [vmem:[%s758 + $0x44] sm:$0xf]
        %v1063 = vld [vmem:[%s758 + $0x48] sm:$0xff]
        %v1064 = vld [vmem:[%s758 + $0x50] sm:$0xf]
        %v1065 = vld [vmem:[%s758 + $0x54] sm:$0xff]
        %v1066 = vld [vmem:[%s758 + $0x5c] sm:$0xf]
        %v1067 = vld [vmem:[%s758 + $0x60] sm:$0xff]
        %v1068 = vld [vmem:[%s758 + $0x68] sm:$0xf]
        %v1069 = vld [vmem:[%s758 + $0x6c] sm:$0xff]
        %v1070 = vld [vmem:[%s758 + $0x74] sm:$0xf]
        %v1071 = vld [vmem:[%s758 + $0x78] sm:$0xff]
        %v1072 = vld [vmem:[%s758 + $0x80] sm:$0xf]
        %v1073 = vld [vmem:[%s758 + $0x84] sm:$0xff]
        %v1074 = vld [vmem:[%s758 + $0x8c] sm:$0xf]
        %v1075 = vld [vmem:[%s758 + $0x90] sm:$0xff]
        %v1076 = vld [vmem:[%s758 + $0x98] sm:$0xf]
        %v1077 = vld [vmem:[%s758 + $0x9c] sm:$0xff]
        %v1078 = vld [vmem:[%s758 + $0xa4] sm:$0xf]
        %v1079 = vld [vmem:[%s758 + $0xa8] sm:$0xff]
        %v1080 = vld [vmem:[%s758 + $0xb0] sm:$0xf]
        %v1081 = vld [vmem:[%s758 + $0xb4] sm:$0xff]
        %v1082 = vld [vmem:[%s758 + $0xbc] sm:$0xf]
        %v1083 = vld [vmem:[%s768] sm:$0x7]
        %v1085 = vperm.slane %v1083, 0
        %v1086 = vperm.slane %v1083, 1
        %v1087 = vperm.slane %v1083, 2
        %v1123 = vunpack.c.l.b16 %v1051
        %v1124 = vunpack.c.h.b16 %v1051
        %v1125 = vunpack.c.l.b16 %v1052
        %v1126 = vunpack.c.l.b16 %v1053
        %v1127 = vunpack.c.h.b16 %v1053
        %v1128 = vunpack.c.l.b16 %v1054
        %v1129 = vunpack.c.l.b16 %v1055
        %v1130 = vunpack.c.h.b16 %v1055
        %v1131 = vunpack.c.l.b16 %v1056
        %v1132 = vunpack.c.l.b16 %v1057
        %v1133 = vunpack.c.h.b16 %v1057
        %v1134 = vunpack.c.l.b16 %v1058
        %v1135 = vunpack.c.l.b16 %v1059
        %v1136 = vunpack.c.h.b16 %v1059
        %v1137 = vunpack.c.l.b16 %v1060
        %v1138 = vunpack.c.l.b16 %v1061
        %v1139 = vunpack.c.h.b16 %v1061
        %v1140 = vunpack.c.l.b16 %v1062
        %v1141 = vunpack.c.l.b16 %v1063
        %v1142 = vunpack.c.h.b16 %v1063
        %v1143 = vunpack.c.l.b16 %v1064
        %v1144 = vunpack.c.l.b16 %v1065
        %v1145 = vunpack.c.h.b16 %v1065
        %v1146 = vunpack.c.l.b16 %v1066
        %v1147 = vunpack.c.l.b16 %v1067
        %v1148 = vunpack.c.h.b16 %v1067
        %v1149 = vunpack.c.l.b16 %v1068
        %v1150 = vunpack.c.l.b16 %v1069
        %v1151 = vunpack.c.h.b16 %v1069
        %v1152 = vunpack.c.l.b16 %v1070
        %v1153 = vunpack.c.l.b16 %v1071
        %v1154 = vunpack.c.h.b16 %v1071
        %v1155 = vunpack.c.l.b16 %v1072
        %v1156 = vunpack.c.l.b16 %v1073
        %v1157 = vunpack.c.h.b16 %v1073
        %v1158 = vunpack.c.l.b16 %v1074
        %v1159 = vunpack.c.l.b16 %v1075
        %v1160 = vunpack.c.h.b16 %v1075
        %v1161 = vunpack.c.l.b16 %v1076
        %v1162 = vunpack.c.l.b16 %v1077
        %v1163 = vunpack.c.h.b16 %v1077
        %v1164 = vunpack.c.l.b16 %v1078
        %v1165 = vunpack.c.l.b16 %v1079
        %v1166 = vunpack.c.h.b16 %v1079
        %v1167 = vunpack.c.l.b16 %v1080
        %v1168 = vunpack.c.l.b16 %v1081
        %v1169 = vunpack.c.h.b16 %v1081
        %v1170 = vunpack.c.l.b16 %v1082
        %v1171 = vpack.c.b16 %v1126, %v1123
        %v1172 = vpack.c.b16 %v1127, %v1124
        %v1173 = vpack.c.b16 %v1128, %v1125
        %v1174 = vpack.c.b16 %v1132, %v1129
        %v1175 = vpack.c.b16 %v1133, %v1130
        %v1176 = vpack.c.b16 %v1134, %v1131
        %v1177 = vpack.c.b16 %v1138, %v1135
        %v1178 = vpack.c.b16 %v1139, %v1136
        %v1179 = vpack.c.b16 %v1140, %v1137
        %v1180 = vpack.c.b16 %v1144, %v1141
        %v1181 = vpack.c.b16 %v1145, %v1142
        %v1182 = vpack.c.b16 %v1146, %v1143
        %v1183 = vpack.c.b16 %v1150, %v1147
        %v1184 = vpack.c.b16 %v1151, %v1148
        %v1185 = vpack.c.b16 %v1152, %v1149
        %v1186 = vpack.c.b16 %v1156, %v1153
        %v1187 = vpack.c.b16 %v1157, %v1154
        %v1188 = vpack.c.b16 %v1158, %v1155
        %v1189 = vpack.c.b16 %v1162, %v1159
        %v1190 = vpack.c.b16 %v1163, %v1160
        %v1191 = vpack.c.b16 %v1164, %v1161
        %v1192 = vpack.c.b16 %v1168, %v1165
        %v1193 = vpack.c.b16 %v1169, %v1166
        %v1194 = vpack.c.b16 %v1170, %v1167
        %1219 = vmatpush.bf16.msra.mxu0 %v1192
        %1220 = vmatpush.bf16.msra.mxu0 %v1189
        %1221 = vmatpush.bf16.msra.mxu0 %v1186
        %1222 = vmatpush.bf16.msra.mxu0 %v1183
        %1223 = vmatpush.bf16.msra.mxu0 %v1180
        %1224 = vmatpush.bf16.msra.mxu0 %v1177
        %1225 = vmatpush.bf16.msra.mxu0 %v1174
        %1226 = vmatpush.bf16.msra.mxu0 %v1171
        %1227 = vmatmul.bf16.gmra.mxu0 %v1049
        %v1228 = vpop.f32.mrf.mxu0
        %v1229 = vadd.f32 %v1085, %v1228
        %v1230 = vpop.f32.mrf.mxu0
        %v1231 = vadd.f32 %v1085, %v1230
        %1232 = vmatmul.bf16.gmra.mxu0 %v1050
        %v1233 = vpop.f32.mrf.mxu0
        %v1234 = vadd.f32 %v1085, %v1233
        %v1235 = vpop.f32.mrf.mxu0
        %1236 = vdwg.mxu0
        %1237 = vmatpush.bf16.msra.mxu0 %v1193
        %1238 = vmatpush.bf16.msra.mxu0 %v1190
        %1239 = vmatpush.bf16.msra.mxu0 %v1187
        %1240 = vmatpush.bf16.msra.mxu0 %v1184
        %1241 = vmatpush.bf16.msra.mxu0 %v1181
        %1242 = vmatpush.bf16.msra.mxu0 %v1178
        %1243 = vmatpush.bf16.msra.mxu0 %v1175
        %1244 = vmatpush.bf16.msra.mxu0 %v1172
        %1245 = vmatmul.bf16.gmra.mxu0 %v1049
        %v1246 = vpop.f32.mrf.mxu0
        %v1247 = vadd.f32 %v1086, %v1246
        %v1248 = vpop.f32.mrf.mxu0
        %v1249 = vadd.f32 %v1086, %v1248
        %1250 = vmatmul.bf16.gmra.mxu0 %v1050
        %v1251 = vpop.f32.mrf.mxu0
        %v1252 = vadd.f32 %v1086, %v1251
        %v1253 = vpop.f32.mrf.mxu0
        %1254 = vdwg.mxu0
        %1255 = vmatpush.bf16.msra.mxu0 %v1194
        %1256 = vmatpush.bf16.msra.mxu0 %v1191
        %1257 = vmatpush.bf16.msra.mxu0 %v1188
        %1258 = vmatpush.bf16.msra.mxu0 %v1185
        %1259 = vmatpush.bf16.msra.mxu0 %v1182
        %1260 = vmatpush.bf16.msra.mxu0 %v1179
        %1261 = vmatpush.bf16.msra.mxu0 %v1176
        %1262 = vmatpush.bf16.msra.mxu0 %v1173
        %1263 = vmatmul.bf16.gmra.mxu0 %v1049
        %v1264 = vpop.f32.mrf.mxu0
        %v1265 = vadd.f32 %v1087, %v1264
        %v1266 = vpop.f32.mrf.mxu0
        %v1267 = vadd.f32 %v1087, %v1266
        %1268 = vmatmul.bf16.gmra.mxu0 %v1050
        %v1269 = vpop.f32.mrf.mxu0
        %v1270 = vadd.f32 %v1087, %v1269
        %v1271 = vpop.f32.mrf.mxu0
        %1272 = vdwg.mxu0
        %v1273 = vpack.c.bf16 %v1247, %v1229
        %v1274 = vpack.c.bf16 %v1265, %v1265
        %v1275 = vpack.c.bf16 %v1249, %v1231
        %v1276 = vpack.c.bf16 %v1267, %v1267
        %v1277 = vpack.c.bf16 %v1252, %v1234
        %v1278 = vpack.c.bf16 %v1270, %v1270
        %v1279 = vld [vmem:[%s778] sm:$0xf]
        %v1280 = vld [vmem:[%s778 + $0x4] sm:$0xf]
        %v1281 = vld [vmem:[%s778 + $0x8] sm:$0xf]
        %v1282 = vld [vmem:[%s778 + $0xc] sm:$0xf]
        %v1283 = vld [vmem:[%s778 + $0x10] sm:$0xf]
        %v1284 = vld [vmem:[%s778 + $0x14] sm:$0xf]
        %v1285 = vld [vmem:[%s778 + $0x18] sm:$0xf]
        %v1286 = vld [vmem:[%s778 + $0x1c] sm:$0xf]
        %v1287 = vld [vmem:[%s778 + $0x20] sm:$0xf]
        %v1288 = vld [vmem:[%s778 + $0x24] sm:$0xf]
        %v1289 = vld [vmem:[%s778 + $0x28] sm:$0xf]
        %v1290 = vld [vmem:[%s778 + $0x2c] sm:$0xf]
        %v1291 = vld [vmem:[%s778 + $0x30] sm:$0xf]
        %v1292 = vld [vmem:[%s778 + $0x34] sm:$0xf]
        %v1293 = vld [vmem:[%s778 + $0x38] sm:$0xf]
        %v1294 = vld [vmem:[%s778 + $0x3c] sm:$0xf]
        %v1298 = vunpack.c.l.b16 %v1273
        %v1299 = vunpack.c.l.b16 %v1275
        %v1300 = vunpack.c.l.b16 %v1277
        %v1301 = vpack.c.b16 %v1299, %v1298
        %v1302 = vpack.c.b16 %v1300, %v1300
        %v1303 = vunpack.c.h.b16 %v1273
        %v1304 = vunpack.c.h.b16 %v1275
        %v1305 = vunpack.c.h.b16 %v1277
        %v1306 = vpack.c.b16 %v1304, %v1303
        %v1307 = vpack.c.b16 %v1305, %v1305
        %vm1308 = vcmask 261120
        %v1310 = vsel %vm1308, %v1301, 0
        %v1313 = vsel %vm1308, %v1302, 0
        %v1316 = vsel %vm1308, %v1306, 0
        %v1319 = vsel %vm1308, %v1307, 0
        %1321 = vmatpush.bf16.xpose.msra.mxu0 0
        %1322 = vmatpush.bf16.xpose.msra.mxu0 0
        %1323 = vmatpush.bf16.xpose.msra.mxu0 0
        %1324 = vmatpush.bf16.xpose.msra.mxu0 0
        %1325 = vmatpush.bf16.xpose.msra.mxu0 0
        %1326 = vmatpush.bf16.xpose.msra.mxu0 0
        %1327 = vmatpush.bf16.xpose.msra.mxu0 %v1319
        %1328 = vmatpush.bf16.xpose.msra.mxu0 %v1316
        %1329 = vmatmul.bf16.gmra.mxu0 %v1310
        %v1330 = vpop.f32.mrf.mxu0
        %v1331 = vadd.f32 0.0, %v1330
        %v1332 = vpop.f32.mrf.mxu0
        %v1333 = vadd.f32 0.0, %v1332
        %1334 = vmatmul.bf16.gmra.mxu0 %v1313
        %v1335 = vpop.f32.mrf.mxu0
        %v1336 = vadd.f32 0.0, %v1335
        %v1337 = vpop.f32.mrf.mxu0
        %1338 = vdwg.mxu0
        %vm1339 = vcmask 138240
        %v1340 = vsel %vm1339, %v1331, -inf
        %1341 = vmax.xlane.f32.xlu0 %v1340
        %v1342 = vpop.xlane.xlu0 %1341
        %v1343 = vsel %vm1339, %v1333, -inf
        %1344 = vmax.xlane.f32.xlu0 %v1343
        %v1345 = vpop.xlane.xlu0 %1344
        %vm1346 = vcmask 131072
        %v1347 = vsel %vm1346, %v1336, -inf
        %1348 = vmax.xlane.f32.xlu0 %v1347
        %v1349 = vpop.xlane.xlu0 %1348
        %v1350 = vsub.f32 %v1331, %v1342
        %v1351 = vsub.f32 %v1333, %v1345
        %v1352 = vsub.f32 %v1336, %v1349
        %v1353 = vmul.f32 %v1350, 1.442695
        %v1354 = vpow.pop %v1353
        %v1355 = vmul.f32 %v1351, 1.442695
        %v1356 = vpow.pop %v1355
        %v1357 = vmul.f32 %v1352, 1.442695
        %v1358 = vpow.pop %v1357
        %v1359 = vsel %vm1339, %v1354, 0.0
        %1360 = vadd.xlane.f32.xlu0 %v1359
        %v1361 = vpop.xlane.xlu0 %1360
        %v1362 = vsel %vm1339, %v1356, 0.0
        %1363 = vadd.xlane.f32.xlu0 %v1362
        %v1364 = vpop.xlane.xlu0 %1363
        %v1365 = vsel %vm1346, %v1358, 0.0
        %1366 = vadd.xlane.f32.xlu0 %v1365
        %v1367 = vpop.xlane.xlu0 %1366
        %v1368 = vrcp.pop %v1361
        %v1369 = vrcp.pop %v1364
        %v1370 = vrcp.pop %v1367
        %v1371 = vmul.f32 %v1354, %v1368
        %v1372 = vmul.f32 %v1356, %v1369
        %v1373 = vmul.f32 %v1358, %v1370
        %v1374 = vpack.c.bf16 %v1372, %v1371
        %v1375 = vpack.c.bf16 %v1373, %v1373
        %v1379 = vunpack.c.l.b16 %v1274
        %v1380 = vunpack.c.l.b16 %v1276
        %v1381 = vunpack.c.l.b16 %v1278
        %v1382 = vpack.c.b16 %v1380, %v1379
        %v1383 = vpack.c.b16 %v1381, %v1381
        %v1386 = vsel %vm1339, %v1374, 0
        %v1389 = vsel %vm1339, %v1375, 0
        %v1391 = vsel 0, 4294967295, 65535
        %v1392 = vsel %vm971, %v1391, 0
        %v1394 = vand.u32 %v1383, %v1392
        %1396 = vmatpush.bf16.msra.mxu0 0
        %1397 = vmatpush.bf16.msra.mxu0 0
        %1398 = vmatpush.bf16.msra.mxu0 0
        %1399 = vmatpush.bf16.msra.mxu0 0
        %1400 = vmatpush.bf16.msra.mxu0 0
        %1401 = vmatpush.bf16.msra.mxu0 0
        %1402 = vmatpush.bf16.msra.mxu0 %v1394
        %1403 = vmatpush.bf16.msra.mxu0 %v1382
        %1404 = vmatmul.bf16.gmra.mxu0 %v1386
        %v1405 = vpop.f32.mrf.mxu0
        %v1406 = vadd.f32 0.0, %v1405
        %v1407 = vpop.f32.mrf.mxu0
        %v1408 = vadd.f32 0.0, %v1407
        %1409 = vmatmul.bf16.gmra.mxu0 %v1389
        %v1410 = vpop.f32.mrf.mxu0
        %v1411 = vadd.f32 0.0, %v1410
        %v1412 = vpop.f32.mrf.mxu0
        %1413 = vdwg.mxu0
        %v1414 = vpack.c.bf16 %v1408, %v1406
        %v1415 = vpack.c.bf16 %v1411, %v1411
        %1416 = vrot.lane.b32.xlu0 %v1301, 96
        %v1417 = vpop.permute.xlu0 %1416
        %1418 = vrot.lane.b32.xlu0 %v1302, 96
        %v1419 = vpop.permute.xlu0 %1418
        %1420 = vrot.lane.b32.xlu0 %v1306, 96
        %v1421 = vpop.permute.xlu0 %1420
        %1422 = vrot.lane.b32.xlu0 %v1307, 96
        %v1423 = vpop.permute.xlu0 %1422
        %v1425 = vsel %vm1308, %v1417, 0
        %v1428 = vsel %vm1308, %v1419, 0
        %v1431 = vsel %vm1308, %v1421, 0
        %v1434 = vsel %vm1308, %v1423, 0
        %1436 = vmatpush.bf16.xpose.msra.mxu0 0
        %1437 = vmatpush.bf16.xpose.msra.mxu0 0
        %1438 = vmatpush.bf16.xpose.msra.mxu0 0
        %1439 = vmatpush.bf16.xpose.msra.mxu0 0
        %1440 = vmatpush.bf16.xpose.msra.mxu0 0
        %1441 = vmatpush.bf16.xpose.msra.mxu0 0
        %1442 = vmatpush.bf16.xpose.msra.mxu0 %v1434
        %1443 = vmatpush.bf16.xpose.msra.mxu0 %v1431
        %1444 = vmatmul.bf16.gmra.mxu0 %v1425
        %v1445 = vpop.f32.mrf.mxu0
        %v1446 = vadd.f32 0.0, %v1445
        %v1447 = vpop.f32.mrf.mxu0
        %v1448 = vadd.f32 0.0, %v1447
        %1449 = vmatmul.bf16.gmra.mxu0 %v1428
        %v1450 = vpop.f32.mrf.mxu0
        %v1451 = vadd.f32 0.0, %v1450
        %v1452 = vpop.f32.mrf.mxu0
        %1453 = vdwg.mxu0
        %v1454 = vsel %vm1339, %v1446, -inf
        %1455 = vmax.xlane.f32.xlu0 %v1454
        %v1456 = vpop.xlane.xlu0 %1455
        %v1457 = vsel %vm1339, %v1448, -inf
        %1458 = vmax.xlane.f32.xlu0 %v1457
        %v1459 = vpop.xlane.xlu0 %1458
        %v1460 = vsel %vm1346, %v1451, -inf
        %1461 = vmax.xlane.f32.xlu0 %v1460
        %v1462 = vpop.xlane.xlu0 %1461
        %v1463 = vsub.f32 %v1446, %v1456
        %v1464 = vsub.f32 %v1448, %v1459
        %v1465 = vsub.f32 %v1451, %v1462
        %v1466 = vmul.f32 %v1463, 1.442695
        %v1467 = vpow.pop %v1466
        %v1468 = vmul.f32 %v1464, 1.442695
        %v1469 = vpow.pop %v1468
        %v1470 = vmul.f32 %v1465, 1.442695
        %v1471 = vpow.pop %v1470
        %v1472 = vsel %vm1339, %v1467, 0.0
        %1473 = vadd.xlane.f32.xlu0 %v1472
        %v1474 = vpop.xlane.xlu0 %1473
        %v1475 = vsel %vm1339, %v1469, 0.0
        %1476 = vadd.xlane.f32.xlu0 %v1475
        %v1477 = vpop.xlane.xlu0 %1476
        %v1478 = vsel %vm1346, %v1471, 0.0
        %1479 = vadd.xlane.f32.xlu0 %v1478
        %v1480 = vpop.xlane.xlu0 %1479
        %v1481 = vrcp.pop %v1474
        %v1482 = vrcp.pop %v1477
        %v1483 = vrcp.pop %v1480
        %v1484 = vmul.f32 %v1467, %v1481
        %v1485 = vmul.f32 %v1469, %v1482
        %v1486 = vmul.f32 %v1471, %v1483
        %v1487 = vpack.c.bf16 %v1485, %v1484
        %v1488 = vpack.c.bf16 %v1486, %v1486
        %1489 = vrot.lane.b32.xlu0 %v1382, 96
        %v1490 = vpop.permute.xlu0 %1489
        %1491 = vrot.lane.b32.xlu0 %v1383, 96
        %v1492 = vpop.permute.xlu0 %1491
        %v1495 = vsel %vm1339, %v1487, 0
        %v1498 = vsel %vm1339, %v1488, 0
        %v1501 = vand.u32 %v1492, %v1392
        %1503 = vmatpush.bf16.msra.mxu0 0
        %1504 = vmatpush.bf16.msra.mxu0 0
        %1505 = vmatpush.bf16.msra.mxu0 0
        %1506 = vmatpush.bf16.msra.mxu0 0
        %1507 = vmatpush.bf16.msra.mxu0 0
        %1508 = vmatpush.bf16.msra.mxu0 0
        %1509 = vmatpush.bf16.msra.mxu0 %v1501
        %1510 = vmatpush.bf16.msra.mxu0 %v1490
        %1511 = vmatmul.bf16.gmra.mxu0 %v1495
        %v1512 = vpop.f32.mrf.mxu0
        %v1513 = vadd.f32 0.0, %v1512
        %v1514 = vpop.f32.mrf.mxu0
        %v1515 = vadd.f32 0.0, %v1514
        %1516 = vmatmul.bf16.gmra.mxu0 %v1498
        %v1517 = vpop.f32.mrf.mxu0
        %v1518 = vadd.f32 0.0, %v1517
        %v1519 = vpop.f32.mrf.mxu0
        %1520 = vdwg.mxu0
        %v1521 = vpack.c.bf16 %v1515, %v1513
        %v1522 = vpack.c.bf16 %v1518, %v1518
        %v1527 = vunpack.c.l.b16 %v1283
        %v1528 = vunpack.c.l.b16 %v1284
        %v1529 = vunpack.c.l.b16 %v1285
        %v1530 = vunpack.c.l.b16 %v1286
        %v1531 = vpack.c.b16 %v1528, %v1527
        %v1532 = vpack.c.b16 %v1530, %v1529
        %v1536 = vsel %vm1308, %v1521, 0
        %v1539 = vsel %vm1308, %v1522, 0
        %1541 = vmatpush.bf16.msra.mxu0 0
        %1542 = vmatpush.bf16.msra.mxu0 0
        %1543 = vmatpush.bf16.msra.mxu0 0
        %1544 = vmatpush.bf16.msra.mxu0 0
        %1545 = vmatpush.bf16.msra.mxu0 0
        %1546 = vmatpush.bf16.msra.mxu0 0
        %1547 = vmatpush.bf16.msra.mxu0 %v1532
        %1548 = vmatpush.bf16.msra.mxu0 %v1531
        %1549 = vmatmul.bf16.gmra.mxu0 %v1536
        %v1550 = vpop.f32.mrf.mxu0
        %v1551 = vadd.f32 0.0, %v1550
        %v1552 = vpop.f32.mrf.mxu0
        %v1553 = vadd.f32 0.0, %v1552
        %1554 = vmatmul.bf16.gmra.mxu0 %v1539
        %v1555 = vpop.f32.mrf.mxu0
        %v1556 = vadd.f32 0.0, %v1555
        %v1557 = vpop.f32.mrf.mxu0
        %1558 = vdwg.mxu0
        %v1563 = vunpack.c.l.b16 %v1279
        %v1564 = vunpack.c.l.b16 %v1280
        %v1565 = vunpack.c.l.b16 %v1281
        %v1566 = vunpack.c.l.b16 %v1282
        %v1567 = vpack.c.b16 %v1564, %v1563
        %v1568 = vpack.c.b16 %v1566, %v1565
        %v1572 = vsel %vm1308, %v1414, 0
        %v1575 = vsel %vm1308, %v1415, 0
        %1577 = vmatpush.bf16.msra.mxu0 0
        %1578 = vmatpush.bf16.msra.mxu0 0
        %1579 = vmatpush.bf16.msra.mxu0 0
        %1580 = vmatpush.bf16.msra.mxu0 0
        %1581 = vmatpush.bf16.msra.mxu0 0
        %1582 = vmatpush.bf16.msra.mxu0 0
        %1583 = vmatpush.bf16.msra.mxu0 %v1568
        %1584 = vmatpush.bf16.msra.mxu0 %v1567
        %1585 = vmatmul.bf16.gmra.mxu0 %v1572
        %v1586 = vpop.f32.mrf.mxu0
        %v1587 = vadd.f32 %v1551, %v1586
        %v1588 = vpop.f32.mrf.mxu0
        %v1589 = vadd.f32 %v1553, %v1588
        %1590 = vmatmul.bf16.gmra.mxu0 %v1575
        %v1591 = vpop.f32.mrf.mxu0
        %v1592 = vadd.f32 %v1556, %v1591
        %v1593 = vpop.f32.mrf.mxu0
        %1594 = vdwg.mxu0
        %1595 = vrot.lane.b32.xlu0 %v1301, 64
        %v1596 = vpop.permute.xlu0 %1595
        %1597 = vrot.lane.b32.xlu0 %v1302, 64
        %v1598 = vpop.permute.xlu0 %1597
        %1599 = vrot.lane.b32.xlu0 %v1306, 64
        %v1600 = vpop.permute.xlu0 %1599
        %1601 = vrot.lane.b32.xlu0 %v1307, 64
        %v1602 = vpop.permute.xlu0 %1601
        %v1604 = vsel %vm1308, %v1596, 0
        %v1607 = vsel %vm1308, %v1598, 0
        %v1610 = vsel %vm1308, %v1600, 0
        %v1613 = vsel %vm1308, %v1602, 0
        %1615 = vmatpush.bf16.xpose.msra.mxu0 0
        %1616 = vmatpush.bf16.xpose.msra.mxu0 0
        %1617 = vmatpush.bf16.xpose.msra.mxu0 0
        %1618 = vmatpush.bf16.xpose.msra.mxu0 0
        %1619 = vmatpush.bf16.xpose.msra.mxu0 0
        %1620 = vmatpush.bf16.xpose.msra.mxu0 0
        %1621 = vmatpush.bf16.xpose.msra.mxu0 %v1613
        %1622 = vmatpush.bf16.xpose.msra.mxu0 %v1610
        %1623 = vmatmul.bf16.gmra.mxu0 %v1604
        %v1624 = vpop.f32.mrf.mxu0
        %v1625 = vadd.f32 0.0, %v1624
        %v1626 = vpop.f32.mrf.mxu0
        %v1627 = vadd.f32 0.0, %v1626
        %1628 = vmatmul.bf16.gmra.mxu0 %v1607
        %v1629 = vpop.f32.mrf.mxu0
        %v1630 = vadd.f32 0.0, %v1629
        %v1631 = vpop.f32.mrf.mxu0
        %1632 = vdwg.mxu0
        %v1633 = vsel %vm1339, %v1625, -inf
        %1634 = vmax.xlane.f32.xlu0 %v1633
        %v1635 = vpop.xlane.xlu0 %1634
        %v1636 = vsel %vm1339, %v1627, -inf
        %1637 = vmax.xlane.f32.xlu0 %v1636
        %v1638 = vpop.xlane.xlu0 %1637
        %v1639 = vsel %vm1346, %v1630, -inf
        %1640 = vmax.xlane.f32.xlu0 %v1639
        %v1641 = vpop.xlane.xlu0 %1640
        %v1642 = vsub.f32 %v1625, %v1635
        %v1643 = vsub.f32 %v1627, %v1638
        %v1644 = vsub.f32 %v1630, %v1641
        %v1645 = vmul.f32 %v1642, 1.442695
        %v1646 = vpow.pop %v1645
        %v1647 = vmul.f32 %v1643, 1.442695
        %v1648 = vpow.pop %v1647
        %v1649 = vmul.f32 %v1644, 1.442695
        %v1650 = vpow.pop %v1649
        %v1651 = vsel %vm1339, %v1646, 0.0
        %1652 = vadd.xlane.f32.xlu0 %v1651
        %v1653 = vpop.xlane.xlu0 %1652
        %v1654 = vsel %vm1339, %v1648, 0.0
        %1655 = vadd.xlane.f32.xlu0 %v1654
        %v1656 = vpop.xlane.xlu0 %1655
        %v1657 = vsel %vm1346, %v1650, 0.0
        %1658 = vadd.xlane.f32.xlu0 %v1657
        %v1659 = vpop.xlane.xlu0 %1658
        %v1660 = vrcp.pop %v1653
        %v1661 = vrcp.pop %v1656
        %v1662 = vrcp.pop %v1659
        %v1663 = vmul.f32 %v1646, %v1660
        %v1664 = vmul.f32 %v1648, %v1661
        %v1665 = vmul.f32 %v1650, %v1662
        %v1666 = vpack.c.bf16 %v1664, %v1663
        %v1667 = vpack.c.bf16 %v1665, %v1665
        %1668 = vrot.lane.b32.xlu0 %v1382, 64
        %v1669 = vpop.permute.xlu0 %1668
        %1670 = vrot.lane.b32.xlu0 %v1383, 64
        %v1671 = vpop.permute.xlu0 %1670
        %v1674 = vsel %vm1339, %v1666, 0
        %v1677 = vsel %vm1339, %v1667, 0
        %v1680 = vand.u32 %v1671, %v1392
        %1682 = vmatpush.bf16.msra.mxu0 0
        %1683 = vmatpush.bf16.msra.mxu0 0
        %1684 = vmatpush.bf16.msra.mxu0 0
        %1685 = vmatpush.bf16.msra.mxu0 0
        %1686 = vmatpush.bf16.msra.mxu0 0
        %1687 = vmatpush.bf16.msra.mxu0 0
        %1688 = vmatpush.bf16.msra.mxu0 %v1680
        %1689 = vmatpush.bf16.msra.mxu0 %v1669
        %1690 = vmatmul.bf16.gmra.mxu0 %v1674
        %v1691 = vpop.f32.mrf.mxu0
        %v1692 = vadd.f32 0.0, %v1691
        %v1693 = vpop.f32.mrf.mxu0
        %v1694 = vadd.f32 0.0, %v1693
        %1695 = vmatmul.bf16.gmra.mxu0 %v1677
        %v1696 = vpop.f32.mrf.mxu0
        %v1697 = vadd.f32 0.0, %v1696
        %v1698 = vpop.f32.mrf.mxu0
        %1699 = vdwg.mxu0
        %v1700 = vpack.c.bf16 %v1694, %v1692
        %v1701 = vpack.c.bf16 %v1697, %v1697
        %v1706 = vunpack.c.l.b16 %v1287
        %v1707 = vunpack.c.l.b16 %v1288
        %v1708 = vunpack.c.l.b16 %v1289
        %v1709 = vunpack.c.l.b16 %v1290
        %v1710 = vpack.c.b16 %v1707, %v1706
        %v1711 = vpack.c.b16 %v1709, %v1708
        %v1715 = vsel %vm1308, %v1700, 0
        %v1718 = vsel %vm1308, %v1701, 0
        %1720 = vmatpush.bf16.msra.mxu0 0
        %1721 = vmatpush.bf16.msra.mxu0 0
        %1722 = vmatpush.bf16.msra.mxu0 0
        %1723 = vmatpush.bf16.msra.mxu0 0
        %1724 = vmatpush.bf16.msra.mxu0 0
        %1725 = vmatpush.bf16.msra.mxu0 0
        %1726 = vmatpush.bf16.msra.mxu0 %v1711
        %1727 = vmatpush.bf16.msra.mxu0 %v1710
        %1728 = vmatmul.bf16.gmra.mxu0 %v1715
        %v1729 = vpop.f32.mrf.mxu0
        %v1730 = vadd.f32 0.0, %v1729
        %v1731 = vpop.f32.mrf.mxu0
        %v1732 = vadd.f32 0.0, %v1731
        %1733 = vmatmul.bf16.gmra.mxu0 %v1718
        %v1734 = vpop.f32.mrf.mxu0
        %v1735 = vadd.f32 0.0, %v1734
        %v1736 = vpop.f32.mrf.mxu0
        %1737 = vdwg.mxu0
        %v1738 = vadd.f32 %v1587, %v1730
        %v1739 = vadd.f32 %v1589, %v1732
        %v1740 = vadd.f32 %v1592, %v1735
        %1741 = vrot.lane.b32.xlu0 %v1301, 32
        %v1742 = vpop.permute.xlu0 %1741
        %1743 = vrot.lane.b32.xlu0 %v1302, 32
        %v1744 = vpop.permute.xlu0 %1743
        %1745 = vrot.lane.b32.xlu0 %v1306, 32
        %v1746 = vpop.permute.xlu0 %1745
        %1747 = vrot.lane.b32.xlu0 %v1307, 32
        %v1748 = vpop.permute.xlu0 %1747
        %v1750 = vsel %vm1308, %v1742, 0
        %v1753 = vsel %vm1308, %v1744, 0
        %v1756 = vsel %vm1308, %v1746, 0
        %v1759 = vsel %vm1308, %v1748, 0
        %1761 = vmatpush.bf16.xpose.msra.mxu0 0
        %1762 = vmatpush.bf16.xpose.msra.mxu0 0
        %1763 = vmatpush.bf16.xpose.msra.mxu0 0
        %1764 = vmatpush.bf16.xpose.msra.mxu0 0
        %1765 = vmatpush.bf16.xpose.msra.mxu0 0
        %1766 = vmatpush.bf16.xpose.msra.mxu0 0
        %1767 = vmatpush.bf16.xpose.msra.mxu0 %v1759
        %1768 = vmatpush.bf16.xpose.msra.mxu0 %v1756
        %1769 = vmatmul.bf16.gmra.mxu0 %v1750
        %v1770 = vpop.f32.mrf.mxu0
        %v1771 = vadd.f32 0.0, %v1770
        %v1772 = vpop.f32.mrf.mxu0
        %v1773 = vadd.f32 0.0, %v1772
        %1774 = vmatmul.bf16.gmra.mxu0 %v1753
        %v1775 = vpop.f32.mrf.mxu0
        %v1776 = vadd.f32 0.0, %v1775
        %v1777 = vpop.f32.mrf.mxu0
        %1778 = vdwg.mxu0
        %v1779 = vsel %vm1339, %v1771, -inf
        %1780 = vmax.xlane.f32.xlu0 %v1779
        %v1781 = vpop.xlane.xlu0 %1780
        %v1782 = vsel %vm1339, %v1773, -inf
        %1783 = vmax.xlane.f32.xlu0 %v1782
        %v1784 = vpop.xlane.xlu0 %1783
        %v1785 = vsel %vm1346, %v1776, -inf
        %1786 = vmax.xlane.f32.xlu0 %v1785
        %v1787 = vpop.xlane.xlu0 %1786
        %v1788 = vsub.f32 %v1771, %v1781
        %v1789 = vsub.f32 %v1773, %v1784
        %v1790 = vsub.f32 %v1776, %v1787
        %v1791 = vmul.f32 %v1788, 1.442695
        %v1792 = vpow.pop %v1791
        %v1793 = vmul.f32 %v1789, 1.442695
        %v1794 = vpow.pop %v1793
        %v1795 = vmul.f32 %v1790, 1.442695
        %v1796 = vpow.pop %v1795
        %v1797 = vsel %vm1339, %v1792, 0.0
        %1798 = vadd.xlane.f32.xlu0 %v1797
        %v1799 = vpop.xlane.xlu0 %1798
        %v1800 = vsel %vm1339, %v1794, 0.0
        %1801 = vadd.xlane.f32.xlu0 %v1800
        %v1802 = vpop.xlane.xlu0 %1801
        %v1803 = vsel %vm1346, %v1796, 0.0
        %1804 = vadd.xlane.f32.xlu0 %v1803
        %v1805 = vpop.xlane.xlu0 %1804
        %v1806 = vrcp.pop %v1799
        %v1807 = vrcp.pop %v1802
        %v1808 = vrcp.pop %v1805
        %v1809 = vmul.f32 %v1792, %v1806
        %v1810 = vmul.f32 %v1794, %v1807
        %v1811 = vmul.f32 %v1796, %v1808
        %v1812 = vpack.c.bf16 %v1810, %v1809
        %v1813 = vpack.c.bf16 %v1811, %v1811
        %1814 = vrot.lane.b32.xlu0 %v1382, 32
        %v1815 = vpop.permute.xlu0 %1814
        %1816 = vrot.lane.b32.xlu0 %v1383, 32
        %v1817 = vpop.permute.xlu0 %1816
        %v1820 = vsel %vm1339, %v1812, 0
        %v1823 = vsel %vm1339, %v1813, 0
        %v1826 = vand.u32 %v1817, %v1392
        %1828 = vmatpush.bf16.msra.mxu0 0
        %1829 = vmatpush.bf16.msra.mxu0 0
        %1830 = vmatpush.bf16.msra.mxu0 0
        %1831 = vmatpush.bf16.msra.mxu0 0
        %1832 = vmatpush.bf16.msra.mxu0 0
        %1833 = vmatpush.bf16.msra.mxu0 0
        %1834 = vmatpush.bf16.msra.mxu0 %v1826
        %1835 = vmatpush.bf16.msra.mxu0 %v1815
        %1836 = vmatmul.bf16.gmra.mxu0 %v1820
        %v1837 = vpop.f32.mrf.mxu0
        %v1838 = vadd.f32 0.0, %v1837
        %v1839 = vpop.f32.mrf.mxu0
        %v1840 = vadd.f32 0.0, %v1839
        %1841 = vmatmul.bf16.gmra.mxu0 %v1823
        %v1842 = vpop.f32.mrf.mxu0
        %v1843 = vadd.f32 0.0, %v1842
        %v1844 = vpop.f32.mrf.mxu0
        %1845 = vdwg.mxu0
        %v1846 = vpack.c.bf16 %v1840, %v1838
        %v1847 = vpack.c.bf16 %v1843, %v1843
        %v1852 = vunpack.c.l.b16 %v1291
        %v1853 = vunpack.c.l.b16 %v1292
        %v1854 = vunpack.c.l.b16 %v1293
        %v1855 = vunpack.c.l.b16 %v1294
        %v1856 = vpack.c.b16 %v1853, %v1852
        %v1857 = vpack.c.b16 %v1855, %v1854
        %v1861 = vsel %vm1308, %v1846, 0
        %v1864 = vsel %vm1308, %v1847, 0
        %1866 = vmatpush.bf16.msra.mxu0 0
        %1867 = vmatpush.bf16.msra.mxu0 0
        %1868 = vmatpush.bf16.msra.mxu0 0
        %1869 = vmatpush.bf16.msra.mxu0 0
        %1870 = vmatpush.bf16.msra.mxu0 0
        %1871 = vmatpush.bf16.msra.mxu0 0
        %1872 = vmatpush.bf16.msra.mxu0 %v1857
        %1873 = vmatpush.bf16.msra.mxu0 %v1856
        %1874 = vmatmul.bf16.gmra.mxu0 %v1861
        %v1875 = vpop.f32.mrf.mxu0
        %v1876 = vadd.f32 0.0, %v1875
        %v1877 = vpop.f32.mrf.mxu0
        %v1878 = vadd.f32 0.0, %v1877
        %1879 = vmatmul.bf16.gmra.mxu0 %v1864
        %v1880 = vpop.f32.mrf.mxu0
        %v1881 = vadd.f32 0.0, %v1880
        %v1882 = vpop.f32.mrf.mxu0
        %1883 = vdwg.mxu0
        %v1884 = vadd.f32 %v1738, %v1876
        %v1885 = vadd.f32 %v1739, %v1878
        %v1886 = vadd.f32 %v1740, %v1881
        %v1887 = vadd.f32 %v962, %v1884
        %v1888 = vadd.f32 %v963, %v1885
        %v1889 = vadd.f32 %v964, %v1886
        %v1890 = vld [vmem:[%s787] sm:$0x1]
        %v1892 = vperm.slane %v1890, 0
        %v1894 = vadd.f32 %v1887, %v1892
        %v1895 = vadd.f32 %v1888, %v1892
        %v1896 = vadd.f32 %v1889, %v1892
        %v1897 = vld [vmem:[%s929] sm:$0x1]
        %v1898 = vld [vmem:[%s932] sm:$0x1]
        %1899 = vadd.xlane.f32.xlu0 %v1894
        %v1900 = vpop.xlane.xlu0 %1899
        %1901 = vadd.xlane.f32.xlu0 %v1895
        %v1902 = vpop.xlane.xlu0 %1901
        %v1903 = vsel %vm971, %v1896, 0.0
        %1904 = vadd.xlane.f32.xlu0 %v1903
        %v1905 = vpop.xlane.xlu0 %1904
        %v1906 = vmul.f32 %v1900, %v981
        %v1907 = vmul.f32 %v1902, %v981
        %v1908 = vmul.f32 %v1905, %v981
        %v1909 = vsub.f32 %v1894, %v1906
        %v1910 = vsub.f32 %v1895, %v1907
        %v1911 = vsub.f32 %v1896, %v1908
        %v1912 = vmul.f32 %v1909, %v1909
        %v1913 = vmul.f32 %v1910, %v1910
        %v1914 = vmul.f32 %v1911, %v1911
        %1915 = vadd.xlane.f32.xlu0 %v1912
        %v1916 = vpop.xlane.xlu0 %1915
        %1917 = vadd.xlane.f32.xlu0 %v1913
        %v1918 = vpop.xlane.xlu0 %1917
        %v1919 = vsel %vm971, %v1914, 0.0
        %1920 = vadd.xlane.f32.xlu0 %v1919
        %v1921 = vpop.xlane.xlu0 %1920
        %v1922 = vmul.f32 %v1916, %v981
        %v1923 = vmul.f32 %v1918, %v981
        %v1924 = vmul.f32 %v1921, %v981
        %v1925 = vadd.f32 %v1922, 1e-05
        %v1926 = vadd.f32 %v1923, 1e-05
        %v1927 = vadd.f32 %v1924, 1e-05
        %v1928 = vrsqrt.pop %v1925
        %v1929 = vmul.f32 %v1928, %v1925
        %v1930 = vmul.f32 %v1929, %v1928
        %v1931 = vmul.f32 0.5, %v1930
        %v1932 = vsub.f32 1.5, %v1931
        %v1933 = vmul.f32 %v1928, %v1932
        %vm1934 = vweird.f32 %v1925
        %vm1935 = vweird.f32 %v1928
        %vm1936 = vmor %vm1934, %vm1935
        %v1937 = vsel %vm1936, %v1928, %v1933
        %v1938 = vrsqrt.pop %v1926
        %v1939 = vmul.f32 %v1938, %v1926
        %v1940 = vmul.f32 %v1939, %v1938
        %v1941 = vmul.f32 0.5, %v1940
        %v1942 = vsub.f32 1.5, %v1941
        %v1943 = vmul.f32 %v1938, %v1942
        %vm1944 = vweird.f32 %v1926
        %vm1945 = vweird.f32 %v1938
        %vm1946 = vmor %vm1944, %vm1945
        %v1947 = vsel %vm1946, %v1938, %v1943
        %v1948 = vrsqrt.pop %v1927
        %v1949 = vmul.f32 %v1948, %v1927
        %v1950 = vmul.f32 %v1949, %v1948
        %v1951 = vmul.f32 0.5, %v1950
        %v1952 = vsub.f32 1.5, %v1951
        %v1953 = vmul.f32 %v1948, %v1952
        %vm1954 = vweird.f32 %v1927
        %vm1955 = vweird.f32 %v1948
        %vm1956 = vmor %vm1954, %vm1955
        %v1957 = vsel %vm1956, %v1948, %v1953
        %v1958 = vmul.f32 %v1909, %v1937
        %v1959 = vmul.f32 %v1910, %v1947
        %v1960 = vmul.f32 %v1911, %v1957
        %v1962 = vperm.slane %v1897, 0
        %v1964 = vmul.f32 %v1958, %v1962
        %v1965 = vmul.f32 %v1959, %v1962
        %v1966 = vmul.f32 %v1960, %v1962
        %v1968 = vperm.slane %v1898, 0
        %v1970 = vadd.f32 %v1964, %v1968
        %v1971 = vadd.f32 %v1965, %v1968
        %v1972 = vadd.f32 %v1966, %v1968
        %v1973 = vpack.c.bf16 %v1971, %v1970
        %v1974 = vpack.c.bf16 %v1972, %v1972
        %v1975 = vld [vmem:[%s797] sm:$0xff]
        %v1976 = vld [vmem:[%s797 + $0x8] sm:$0xff]
        %v1977 = vld [vmem:[%s797 + $0x10] sm:$0xff]
        %v1978 = vld [vmem:[%s797 + $0x18] sm:$0xff]
        %v1979 = vld [vmem:[%s797 + $0x20] sm:$0xff]
        %v1980 = vld [vmem:[%s797 + $0x28] sm:$0xff]
        %v1981 = vld [vmem:[%s797 + $0x30] sm:$0xff]
        %v1982 = vld [vmem:[%s797 + $0x38] sm:$0xff]
        %v1983 = vld [vmem:[%s797 + $0x40] sm:$0xff]
        %v1984 = vld [vmem:[%s797 + $0x48] sm:$0xff]
        %v1985 = vld [vmem:[%s797 + $0x50] sm:$0xff]
        %v1986 = vld [vmem:[%s797 + $0x58] sm:$0xff]
        %v1987 = vld [vmem:[%s797 + $0x60] sm:$0xff]
        %v1988 = vld [vmem:[%s797 + $0x68] sm:$0xff]
        %v1989 = vld [vmem:[%s797 + $0x70] sm:$0xff]
        %v1990 = vld [vmem:[%s797 + $0x78] sm:$0xff]
        %v1991 = vld [vmem:[%s797 + $0x80] sm:$0xff]
        %v1992 = vld [vmem:[%s797 + $0x88] sm:$0xff]
        %v1993 = vld [vmem:[%s797 + $0x90] sm:$0xff]
        %v1994 = vld [vmem:[%s797 + $0x98] sm:$0xff]
        %v1995 = vld [vmem:[%s797 + $0xa0] sm:$0xff]
        %v1996 = vld [vmem:[%s797 + $0xa8] sm:$0xff]
        %v1997 = vld [vmem:[%s797 + $0xb0] sm:$0xff]
        %v1998 = vld [vmem:[%s797 + $0xb8] sm:$0xff]
        %v1999 = vld [vmem:[%s797 + $0xc0] sm:$0xff]
        %v2000 = vld [vmem:[%s797 + $0xc8] sm:$0xff]
        %v2001 = vld [vmem:[%s797 + $0xd0] sm:$0xff]
        %v2002 = vld [vmem:[%s797 + $0xd8] sm:$0xff]
        %v2003 = vld [vmem:[%s797 + $0xe0] sm:$0xff]
        %v2004 = vld [vmem:[%s797 + $0xe8] sm:$0xff]
        %v2005 = vld [vmem:[%s797 + $0xf0] sm:$0xff]
        %v2006 = vld [vmem:[%s797 + $0xf8] sm:$0xff]
        %v2007 = vld [vmem:[%s936] sm:$0xf]
        %v2009 = vperm.slane %v2007, 0
        %v2010 = vperm.slane %v2007, 1
        %v2011 = vperm.slane %v2007, 2
        %v2012 = vperm.slane %v2007, 3
        %v2049 = vunpack.c.l.b16 %v1975
        %v2050 = vunpack.c.h.b16 %v1975
        %v2051 = vunpack.c.l.b16 %v1976
        %v2052 = vunpack.c.h.b16 %v1976
        %v2053 = vunpack.c.l.b16 %v1977
        %v2054 = vunpack.c.h.b16 %v1977
        %v2055 = vunpack.c.l.b16 %v1978
        %v2056 = vunpack.c.h.b16 %v1978
        %v2057 = vunpack.c.l.b16 %v1979
        %v2058 = vunpack.c.h.b16 %v1979
        %v2059 = vunpack.c.l.b16 %v1980
        %v2060 = vunpack.c.h.b16 %v1980
        %v2061 = vunpack.c.l.b16 %v1981
        %v2062 = vunpack.c.h.b16 %v1981
        %v2063 = vunpack.c.l.b16 %v1982
        %v2064 = vunpack.c.h.b16 %v1982
        %v2065 = vunpack.c.l.b16 %v1983
        %v2066 = vunpack.c.h.b16 %v1983
        %v2067 = vunpack.c.l.b16 %v1984
        %v2068 = vunpack.c.h.b16 %v1984
        %v2069 = vunpack.c.l.b16 %v1985
        %v2070 = vunpack.c.h.b16 %v1985
        %v2071 = vunpack.c.l.b16 %v1986
        %v2072 = vunpack.c.h.b16 %v1986
        %v2073 = vunpack.c.l.b16 %v1987
        %v2074 = vunpack.c.h.b16 %v1987
        %v2075 = vunpack.c.l.b16 %v1988
        %v2076 = vunpack.c.h.b16 %v1988
        %v2077 = vunpack.c.l.b16 %v1989
        %v2078 = vunpack.c.h.b16 %v1989
        %v2079 = vunpack.c.l.b16 %v1990
        %v2080 = vunpack.c.h.b16 %v1990
        %v2081 = vunpack.c.l.b16 %v1991
        %v2082 = vunpack.c.h.b16 %v1991
        %v2083 = vunpack.c.l.b16 %v1992
        %v2084 = vunpack.c.h.b16 %v1992
        %v2085 = vunpack.c.l.b16 %v1993
        %v2086 = vunpack.c.h.b16 %v1993
        %v2087 = vunpack.c.l.b16 %v1994
        %v2088 = vunpack.c.h.b16 %v1994
        %v2089 = vunpack.c.l.b16 %v1995
        %v2090 = vunpack.c.h.b16 %v1995
        %v2091 = vunpack.c.l.b16 %v1996
        %v2092 = vunpack.c.h.b16 %v1996
        %v2093 = vunpack.c.l.b16 %v1997
        %v2094 = vunpack.c.h.b16 %v1997
        %v2095 = vunpack.c.l.b16 %v1998
        %v2096 = vunpack.c.h.b16 %v1998
        %v2097 = vunpack.c.l.b16 %v1999
        %v2098 = vunpack.c.h.b16 %v1999
        %v2099 = vunpack.c.l.b16 %v2000
        %v2100 = vunpack.c.h.b16 %v2000
        %v2101 = vunpack.c.l.b16 %v2001
        %v2102 = vunpack.c.h.b16 %v2001
        %v2103 = vunpack.c.l.b16 %v2002
        %v2104 = vunpack.c.h.b16 %v2002
        %v2105 = vunpack.c.l.b16 %v2003
        %v2106 = vunpack.c.h.b16 %v2003
        %v2107 = vunpack.c.l.b16 %v2004
        %v2108 = vunpack.c.h.b16 %v2004
        %v2109 = vunpack.c.l.b16 %v2005
        %v2110 = vunpack.c.h.b16 %v2005
        %v2111 = vunpack.c.l.b16 %v2006
        %v2112 = vunpack.c.h.b16 %v2006
        %v2113 = vpack.c.b16 %v2053, %v2049
        %v2114 = vpack.c.b16 %v2054, %v2050
        %v2115 = vpack.c.b16 %v2055, %v2051
        %v2116 = vpack.c.b16 %v2056, %v2052
        %v2117 = vpack.c.b16 %v2061, %v2057
        %v2118 = vpack.c.b16 %v2062, %v2058
        %v2119 = vpack.c.b16 %v2063, %v2059
        %v2120 = vpack.c.b16 %v2064, %v2060
        %v2121 = vpack.c.b16 %v2069, %v2065
        %v2122 = vpack.c.b16 %v2070, %v2066
        %v2123 = vpack.c.b16 %v2071, %v2067
        %v2124 = vpack.c.b16 %v2072, %v2068
        %v2125 = vpack.c.b16 %v2077, %v2073
        %v2126 = vpack.c.b16 %v2078, %v2074
        %v2127 = vpack.c.b16 %v2079, %v2075
        %v2128 = vpack.c.b16 %v2080, %v2076
        %v2129 = vpack.c.b16 %v2085, %v2081
        %v2130 = vpack.c.b16 %v2086, %v2082
        %v2131 = vpack.c.b16 %v2087, %v2083
        %v2132 = vpack.c.b16 %v2088, %v2084
        %v2133 = vpack.c.b16 %v2093, %v2089
        %v2134 = vpack.c.b16 %v2094, %v2090
        %v2135 = vpack.c.b16 %v2095, %v2091
        %v2136 = vpack.c.b16 %v2096, %v2092
        %v2137 = vpack.c.b16 %v2101, %v2097
        %v2138 = vpack.c.b16 %v2102, %v2098
        %v2139 = vpack.c.b16 %v2103, %v2099
        %v2140 = vpack.c.b16 %v2104, %v2100
        %v2141 = vpack.c.b16 %v2109, %v2105
        %v2142 = vpack.c.b16 %v2110, %v2106
        %v2143 = vpack.c.b16 %v2111, %v2107
        %v2144 = vpack.c.b16 %v2112, %v2108
        %2177 = vmatpush.bf16.msra.mxu0 %v2141
        %2178 = vmatpush.bf16.msra.mxu0 %v2137
        %2179 = vmatpush.bf16.msra.mxu0 %v2133
        %2180 = vmatpush.bf16.msra.mxu0 %v2129
        %2181 = vmatpush.bf16.msra.mxu0 %v2125
        %2182 = vmatpush.bf16.msra.mxu0 %v2121
        %2183 = vmatpush.bf16.msra.mxu0 %v2117
        %2184 = vmatpush.bf16.msra.mxu0 %v2113
        %2185 = vmatmul.bf16.gmra.mxu0 %v1973
        %v2186 = vpop.f32.mrf.mxu0
        %v2187 = vadd.f32 %v2009, %v2186
        %v2188 = vpop.f32.mrf.mxu0
        %v2189 = vadd.f32 %v2009, %v2188
        %2190 = vmatmul.bf16.gmra.mxu0 %v1974
        %v2191 = vpop.f32.mrf.mxu0
        %v2192 = vadd.f32 %v2009, %v2191
        %v2193 = vpop.f32.mrf.mxu0
        %2194 = vdwg.mxu0
        %2195 = vmatpush.bf16.msra.mxu0 %v2142
        %2196 = vmatpush.bf16.msra.mxu0 %v2138
        %2197 = vmatpush.bf16.msra.mxu0 %v2134
        %2198 = vmatpush.bf16.msra.mxu0 %v2130
        %2199 = vmatpush.bf16.msra.mxu0 %v2126
        %2200 = vmatpush.bf16.msra.mxu0 %v2122
        %2201 = vmatpush.bf16.msra.mxu0 %v2118
        %2202 = vmatpush.bf16.msra.mxu0 %v2114
        %2203 = vmatmul.bf16.gmra.mxu0 %v1973
        %v2204 = vpop.f32.mrf.mxu0
        %v2205 = vadd.f32 %v2010, %v2204
        %v2206 = vpop.f32.mrf.mxu0
        %v2207 = vadd.f32 %v2010, %v2206
        %2208 = vmatmul.bf16.gmra.mxu0 %v1974
        %v2209 = vpop.f32.mrf.mxu0
        %v2210 = vadd.f32 %v2010, %v2209
        %v2211 = vpop.f32.mrf.mxu0
        %2212 = vdwg.mxu0
        %2213 = vmatpush.bf16.msra.mxu0 %v2143
        %2214 = vmatpush.bf16.msra.mxu0 %v2139
        %2215 = vmatpush.bf16.msra.mxu0 %v2135
        %2216 = vmatpush.bf16.msra.mxu0 %v2131
        %2217 = vmatpush.bf16.msra.mxu0 %v2127
        %2218 = vmatpush.bf16.msra.mxu0 %v2123
        %2219 = vmatpush.bf16.msra.mxu0 %v2119
        %2220 = vmatpush.bf16.msra.mxu0 %v2115
        %2221 = vmatmul.bf16.gmra.mxu0 %v1973
        %v2222 = vpop.f32.mrf.mxu0
        %v2223 = vadd.f32 %v2011, %v2222
        %v2224 = vpop.f32.mrf.mxu0
        %v2225 = vadd.f32 %v2011, %v2224
        %2226 = vmatmul.bf16.gmra.mxu0 %v1974
        %v2227 = vpop.f32.mrf.mxu0
        %v2228 = vadd.f32 %v2011, %v2227
        %v2229 = vpop.f32.mrf.mxu0
        %2230 = vdwg.mxu0
        %2231 = vmatpush.bf16.msra.mxu0 %v2144
        %2232 = vmatpush.bf16.msra.mxu0 %v2140
        %2233 = vmatpush.bf16.msra.mxu0 %v2136
        %2234 = vmatpush.bf16.msra.mxu0 %v2132
        %2235 = vmatpush.bf16.msra.mxu0 %v2128
        %2236 = vmatpush.bf16.msra.mxu0 %v2124
        %2237 = vmatpush.bf16.msra.mxu0 %v2120
        %2238 = vmatpush.bf16.msra.mxu0 %v2116
        %2239 = vmatmul.bf16.gmra.mxu0 %v1973
        %v2240 = vpop.f32.mrf.mxu0
        %v2241 = vadd.f32 %v2012, %v2240
        %v2242 = vpop.f32.mrf.mxu0
        %v2243 = vadd.f32 %v2012, %v2242
        %2244 = vmatmul.bf16.gmra.mxu0 %v1974
        %v2245 = vpop.f32.mrf.mxu0
        %v2246 = vadd.f32 %v2012, %v2245
        %v2247 = vpop.f32.mrf.mxu0
        %2248 = vdwg.mxu0
        %v2249 = vmax.f32 %v2187, 0.0
        %v2250 = vmax.f32 %v2205, 0.0
        %v2251 = vmax.f32 %v2223, 0.0
        %v2252 = vmax.f32 %v2241, 0.0
        %v2253 = vmax.f32 %v2189, 0.0
        %v2254 = vmax.f32 %v2207, 0.0
        %v2255 = vmax.f32 %v2225, 0.0
        %v2256 = vmax.f32 %v2243, 0.0
        %v2257 = vmax.f32 %v2192, 0.0
        %v2258 = vmax.f32 %v2210, 0.0
        %v2259 = vmax.f32 %v2228, 0.0
        %v2260 = vmax.f32 %v2246, 0.0
        %v2261 = vpack.c.bf16 %v2253, %v2249
        %v2262 = vpack.c.bf16 %v2254, %v2250
        %v2263 = vpack.c.bf16 %v2255, %v2251
        %v2264 = vpack.c.bf16 %v2256, %v2252
        %v2265 = vpack.c.bf16 %v2257, %v2257
        %v2266 = vpack.c.bf16 %v2258, %v2258
        %v2267 = vpack.c.bf16 %v2259, %v2259
        %v2268 = vpack.c.bf16 %v2260, %v2260
        %v2269 = vld [vmem:[%s807] sm:$0xf]
        %v2270 = vld [vmem:[%s807 + $0x4] sm:$0xf]
        %v2271 = vld [vmem:[%s807 + $0x8] sm:$0xf]
        %v2272 = vld [vmem:[%s807 + $0xc] sm:$0xf]
        %v2273 = vld [vmem:[%s807 + $0x10] sm:$0xf]
        %v2274 = vld [vmem:[%s807 + $0x14] sm:$0xf]
        %v2275 = vld [vmem:[%s807 + $0x18] sm:$0xf]
        %v2276 = vld [vmem:[%s807 + $0x1c] sm:$0xf]
        %v2277 = vld [vmem:[%s807 + $0x20] sm:$0xf]
        %v2278 = vld [vmem:[%s807 + $0x24] sm:$0xf]
        %v2279 = vld [vmem:[%s807 + $0x28] sm:$0xf]
        %v2280 = vld [vmem:[%s807 + $0x2c] sm:$0xf]
        %v2281 = vld [vmem:[%s807 + $0x30] sm:$0xf]
        %v2282 = vld [vmem:[%s807 + $0x34] sm:$0xf]
        %v2283 = vld [vmem:[%s807 + $0x38] sm:$0xf]
        %v2284 = vld [vmem:[%s807 + $0x3c] sm:$0xf]
        %v2285 = vld [vmem:[%s807 + $0x40] sm:$0xf]
        %v2286 = vld [vmem:[%s807 + $0x44] sm:$0xf]
        %v2287 = vld [vmem:[%s807 + $0x48] sm:$0xf]
        %v2288 = vld [vmem:[%s807 + $0x4c] sm:$0xf]
        %v2289 = vld [vmem:[%s807 + $0x50] sm:$0xf]
        %v2290 = vld [vmem:[%s807 + $0x54] sm:$0xf]
        %v2291 = vld [vmem:[%s807 + $0x58] sm:$0xf]
        %v2292 = vld [vmem:[%s807 + $0x5c] sm:$0xf]
        %v2293 = vld [vmem:[%s807 + $0x60] sm:$0xf]
        %v2294 = vld [vmem:[%s807 + $0x64] sm:$0xf]
        %v2295 = vld [vmem:[%s807 + $0x68] sm:$0xf]
        %v2296 = vld [vmem:[%s807 + $0x6c] sm:$0xf]
        %v2297 = vld [vmem:[%s807 + $0x70] sm:$0xf]
        %v2298 = vld [vmem:[%s807 + $0x74] sm:$0xf]
        %v2299 = vld [vmem:[%s807 + $0x78] sm:$0xf]
        %v2300 = vld [vmem:[%s807 + $0x7c] sm:$0xf]
        %v2301 = vld [vmem:[%s807 + $0x80] sm:$0xf]
        %v2302 = vld [vmem:[%s807 + $0x84] sm:$0xf]
        %v2303 = vld [vmem:[%s807 + $0x88] sm:$0xf]
        %v2304 = vld [vmem:[%s807 + $0x8c] sm:$0xf]
        %v2305 = vld [vmem:[%s807 + $0x90] sm:$0xf]
        %v2306 = vld [vmem:[%s807 + $0x94] sm:$0xf]
        %v2307 = vld [vmem:[%s807 + $0x98] sm:$0xf]
        %v2308 = vld [vmem:[%s807 + $0x9c] sm:$0xf]
        %v2309 = vld [vmem:[%s807 + $0xa0] sm:$0xf]
        %v2310 = vld [vmem:[%s807 + $0xa4] sm:$0xf]
        %v2311 = vld [vmem:[%s807 + $0xa8] sm:$0xf]
        %v2312 = vld [vmem:[%s807 + $0xac] sm:$0xf]
        %v2313 = vld [vmem:[%s807 + $0xb0] sm:$0xf]
        %v2314 = vld [vmem:[%s807 + $0xb4] sm:$0xf]
        %v2315 = vld [vmem:[%s807 + $0xb8] sm:$0xf]
        %v2316 = vld [vmem:[%s807 + $0xbc] sm:$0xf]
        %v2317 = vld [vmem:[%s807 + $0xc0] sm:$0xf]
        %v2318 = vld [vmem:[%s807 + $0xc4] sm:$0xf]
        %v2319 = vld [vmem:[%s807 + $0xc8] sm:$0xf]
        %v2320 = vld [vmem:[%s807 + $0xcc] sm:$0xf]
        %v2321 = vld [vmem:[%s807 + $0xd0] sm:$0xf]
        %v2322 = vld [vmem:[%s807 + $0xd4] sm:$0xf]
        %v2323 = vld [vmem:[%s807 + $0xd8] sm:$0xf]
        %v2324 = vld [vmem:[%s807 + $0xdc] sm:$0xf]
        %v2325 = vld [vmem:[%s807 + $0xe0] sm:$0xf]
        %v2326 = vld [vmem:[%s807 + $0xe4] sm:$0xf]
        %v2327 = vld [vmem:[%s807 + $0xe8] sm:$0xf]
        %v2328 = vld [vmem:[%s807 + $0xec] sm:$0xf]
        %v2329 = vld [vmem:[%s807 + $0xf0] sm:$0xf]
        %v2330 = vld [vmem:[%s807 + $0xf4] sm:$0xf]
        %v2331 = vld [vmem:[%s807 + $0xf8] sm:$0xf]
        %v2332 = vld [vmem:[%s807 + $0xfc] sm:$0xf]
        %v2333 = vld [vmem:[%s816] sm:$0x1]
        %v2335 = vperm.slane %v2333, 0
        %v2401 = vunpack.c.l.b16 %v2269
        %v2402 = vunpack.c.l.b16 %v2270
        %v2403 = vunpack.c.l.b16 %v2271
        %v2404 = vunpack.c.l.b16 %v2272
        %v2405 = vunpack.c.l.b16 %v2273
        %v2406 = vunpack.c.l.b16 %v2274
        %v2407 = vunpack.c.l.b16 %v2275
        %v2408 = vunpack.c.l.b16 %v2276
        %v2409 = vunpack.c.l.b16 %v2277
        %v2410 = vunpack.c.l.b16 %v2278
        %v2411 = vunpack.c.l.b16 %v2279
        %v2412 = vunpack.c.l.b16 %v2280
        %v2413 = vunpack.c.l.b16 %v2281
        %v2414 = vunpack.c.l.b16 %v2282
        %v2415 = vunpack.c.l.b16 %v2283
        %v2416 = vunpack.c.l.b16 %v2284
        %v2417 = vunpack.c.l.b16 %v2285
        %v2418 = vunpack.c.l.b16 %v2286
        %v2419 = vunpack.c.l.b16 %v2287
        %v2420 = vunpack.c.l.b16 %v2288
        %v2421 = vunpack.c.l.b16 %v2289
        %v2422 = vunpack.c.l.b16 %v2290
        %v2423 = vunpack.c.l.b16 %v2291
        %v2424 = vunpack.c.l.b16 %v2292
        %v2425 = vunpack.c.l.b16 %v2293
        %v2426 = vunpack.c.l.b16 %v2294
        %v2427 = vunpack.c.l.b16 %v2295
        %v2428 = vunpack.c.l.b16 %v2296
        %v2429 = vunpack.c.l.b16 %v2297
        %v2430 = vunpack.c.l.b16 %v2298
        %v2431 = vunpack.c.l.b16 %v2299
        %v2432 = vunpack.c.l.b16 %v2300
        %v2433 = vunpack.c.l.b16 %v2301
        %v2434 = vunpack.c.l.b16 %v2302
        %v2435 = vunpack.c.l.b16 %v2303
        %v2436 = vunpack.c.l.b16 %v2304
        %v2437 = vunpack.c.l.b16 %v2305
        %v2438 = vunpack.c.l.b16 %v2306
        %v2439 = vunpack.c.l.b16 %v2307
        %v2440 = vunpack.c.l.b16 %v2308
        %v2441 = vunpack.c.l.b16 %v2309
        %v2442 = vunpack.c.l.b16 %v2310
        %v2443 = vunpack.c.l.b16 %v2311
        %v2444 = vunpack.c.l.b16 %v2312
        %v2445 = vunpack.c.l.b16 %v2313
        %v2446 = vunpack.c.l.b16 %v2314
        %v2447 = vunpack.c.l.b16 %v2315
        %v2448 = vunpack.c.l.b16 %v2316
        %v2449 = vunpack.c.l.b16 %v2317
        %v2450 = vunpack.c.l.b16 %v2318
        %v2451 = vunpack.c.l.b16 %v2319
        %v2452 = vunpack.c.l.b16 %v2320
        %v2453 = vunpack.c.l.b16 %v2321
        %v2454 = vunpack.c.l.b16 %v2322
        %v2455 = vunpack.c.l.b16 %v2323
        %v2456 = vunpack.c.l.b16 %v2324
        %v2457 = vunpack.c.l.b16 %v2325
        %v2458 = vunpack.c.l.b16 %v2326
        %v2459 = vunpack.c.l.b16 %v2327
        %v2460 = vunpack.c.l.b16 %v2328
        %v2461 = vunpack.c.l.b16 %v2329
        %v2462 = vunpack.c.l.b16 %v2330
        %v2463 = vunpack.c.l.b16 %v2331
        %v2464 = vunpack.c.l.b16 %v2332
        %v2465 = vpack.c.b16 %v2402, %v2401
        %v2466 = vpack.c.b16 %v2404, %v2403
        %v2467 = vpack.c.b16 %v2406, %v2405
        %v2468 = vpack.c.b16 %v2408, %v2407
        %v2469 = vpack.c.b16 %v2410, %v2409
        %v2470 = vpack.c.b16 %v2412, %v2411
        %v2471 = vpack.c.b16 %v2414, %v2413
        %v2472 = vpack.c.b16 %v2416, %v2415
        %v2473 = vpack.c.b16 %v2418, %v2417
        %v2474 = vpack.c.b16 %v2420, %v2419
        %v2475 = vpack.c.b16 %v2422, %v2421
        %v2476 = vpack.c.b16 %v2424, %v2423
        %v2477 = vpack.c.b16 %v2426, %v2425
        %v2478 = vpack.c.b16 %v2428, %v2427
        %v2479 = vpack.c.b16 %v2430, %v2429
        %v2480 = vpack.c.b16 %v2432, %v2431
        %v2481 = vpack.c.b16 %v2434, %v2433
        %v2482 = vpack.c.b16 %v2436, %v2435
        %v2483 = vpack.c.b16 %v2438, %v2437
        %v2484 = vpack.c.b16 %v2440, %v2439
        %v2485 = vpack.c.b16 %v2442, %v2441
        %v2486 = vpack.c.b16 %v2444, %v2443
        %v2487 = vpack.c.b16 %v2446, %v2445
        %v2488 = vpack.c.b16 %v2448, %v2447
        %v2489 = vpack.c.b16 %v2450, %v2449
        %v2490 = vpack.c.b16 %v2452, %v2451
        %v2491 = vpack.c.b16 %v2454, %v2453
        %v2492 = vpack.c.b16 %v2456, %v2455
        %v2493 = vpack.c.b16 %v2458, %v2457
        %v2494 = vpack.c.b16 %v2460, %v2459
        %v2495 = vpack.c.b16 %v2462, %v2461
        %v2496 = vpack.c.b16 %v2464, %v2463
        %2529 = vmatpush.bf16.msra.mxu0 %v2472
        %2530 = vmatpush.bf16.msra.mxu0 %v2471
        %2531 = vmatpush.bf16.msra.mxu0 %v2470
        %2532 = vmatpush.bf16.msra.mxu0 %v2469
        %2533 = vmatpush.bf16.msra.mxu0 %v2468
        %2534 = vmatpush.bf16.msra.mxu0 %v2467
        %2535 = vmatpush.bf16.msra.mxu0 %v2466
        %2536 = vmatpush.bf16.msra.mxu0 %v2465
        %2537 = vmatmul.bf16.gmra.mxu0 %v2261
        %v2538 = vpop.f32.mrf.mxu0
        %v2539 = vadd.f32 %v2335, %v2538
        %v2540 = vpop.f32.mrf.mxu0
        %v2541 = vadd.f32 %v2335, %v2540
        %2542 = vmatmul.bf16.gmra.mxu0 %v2265
        %v2543 = vpop.f32.mrf.mxu0
        %v2544 = vadd.f32 %v2335, %v2543
        %v2545 = vpop.f32.mrf.mxu0
        %2546 = vdwg.mxu0
        %2547 = vmatpush.bf16.msra.mxu0 %v2480
        %2548 = vmatpush.bf16.msra.mxu0 %v2479
        %2549 = vmatpush.bf16.msra.mxu0 %v2478
        %2550 = vmatpush.bf16.msra.mxu0 %v2477
        %2551 = vmatpush.bf16.msra.mxu0 %v2476
        %2552 = vmatpush.bf16.msra.mxu0 %v2475
        %2553 = vmatpush.bf16.msra.mxu0 %v2474
        %2554 = vmatpush.bf16.msra.mxu0 %v2473
        %2555 = vmatmul.bf16.gmra.mxu0 %v2262
        %v2556 = vpop.f32.mrf.mxu0
        %v2557 = vadd.f32 %v2539, %v2556
        %v2558 = vpop.f32.mrf.mxu0
        %v2559 = vadd.f32 %v2541, %v2558
        %2560 = vmatmul.bf16.gmra.mxu0 %v2266
        %v2561 = vpop.f32.mrf.mxu0
        %v2562 = vadd.f32 %v2544, %v2561
        %v2563 = vpop.f32.mrf.mxu0
        %2564 = vdwg.mxu0
        %2565 = vmatpush.bf16.msra.mxu0 %v2488
        %2566 = vmatpush.bf16.msra.mxu0 %v2487
        %2567 = vmatpush.bf16.msra.mxu0 %v2486
        %2568 = vmatpush.bf16.msra.mxu0 %v2485
        %2569 = vmatpush.bf16.msra.mxu0 %v2484
        %2570 = vmatpush.bf16.msra.mxu0 %v2483
        %2571 = vmatpush.bf16.msra.mxu0 %v2482
        %2572 = vmatpush.bf16.msra.mxu0 %v2481
        %2573 = vmatmul.bf16.gmra.mxu0 %v2263
        %v2574 = vpop.f32.mrf.mxu0
        %v2575 = vadd.f32 %v2557, %v2574
        %v2576 = vpop.f32.mrf.mxu0
        %v2577 = vadd.f32 %v2559, %v2576
        %2578 = vmatmul.bf16.gmra.mxu0 %v2267
        %v2579 = vpop.f32.mrf.mxu0
        %v2580 = vadd.f32 %v2562, %v2579
        %v2581 = vpop.f32.mrf.mxu0
        %2582 = vdwg.mxu0
        %2583 = vmatpush.bf16.msra.mxu0 %v2496
        %2584 = vmatpush.bf16.msra.mxu0 %v2495
        %2585 = vmatpush.bf16.msra.mxu0 %v2494
        %2586 = vmatpush.bf16.msra.mxu0 %v2493
        %2587 = vmatpush.bf16.msra.mxu0 %v2492
        %2588 = vmatpush.bf16.msra.mxu0 %v2491
        %2589 = vmatpush.bf16.msra.mxu0 %v2490
        %2590 = vmatpush.bf16.msra.mxu0 %v2489
        %2591 = vmatmul.bf16.gmra.mxu0 %v2264
        %v2592 = vpop.f32.mrf.mxu0
        %v2593 = vadd.f32 %v2575, %v2592
        %v2594 = vpop.f32.mrf.mxu0
        %v2595 = vadd.f32 %v2577, %v2594
        %2596 = vmatmul.bf16.gmra.mxu0 %v2268
        %v2597 = vpop.f32.mrf.mxu0
        %v2598 = vadd.f32 %v2580, %v2597
        %v2599 = vpop.f32.mrf.mxu0
        %2600 = vdwg.mxu0
        %v2601 = vadd.f32 %v1894, %v2593
        %v2602 = vadd.f32 %v1895, %v2595
        %v2603 = vadd.f32 %v1896, %v2598
        %2604 = vst [vmem:[#allocation2] sm:$0xff] %v2601
        %2605 = vst [vmem:[#allocation2 + $0x8] sm:$0xff] %v2602
        %2606 = vst [vmem:[#allocation2 + $0x10] sm:$0x1] %v2603
        %p2607 = scmp.eq.s32.totalorder %s51, 2
        // Predicated region
        $region129: #{forward.1} parent=87 // pred_check
          %p2608 = pneg %p2607
        $region130: #{forward.1} parent=87 // pred_check_branch
          %2610 = sbr.rel (%p2608) target = $region132
        $region131: #{forward.1} parent=87 // pred_region
          %v2611 = vpack.c.bf16 %v2601, %v2601
          %v2612 = vld [vmem:[#allocation17] sm:$0xf]
          %v2613 = vld [vmem:[#allocation17 + $0x4] sm:$0xf]
          %v2614 = vld [vmem:[#allocation17 + $0x8] sm:$0xf]
          %v2615 = vld [vmem:[#allocation17 + $0xc] sm:$0xf]
          %v2616 = vld [vmem:[#allocation17 + $0x10] sm:$0xf]
          %v2617 = vld [vmem:[#allocation17 + $0x14] sm:$0xf]
          %v2618 = vld [vmem:[#allocation17 + $0x18] sm:$0xf]
          %v2619 = vld [vmem:[#allocation17 + $0x1c] sm:$0xf]
          %v2620 = vld [vmem:[#allocation17 + $0x20] sm:$0xf]
          %v2621 = vld [vmem:[#allocation17 + $0x24] sm:$0xf]
          %v2622 = vld [vmem:[#allocation17 + $0x28] sm:$0xf]
          %v2623 = vld [vmem:[#allocation17 + $0x2c] sm:$0xf]
          %v2624 = vld [vmem:[#allocation17 + $0x30] sm:$0xf]
          %v2625 = vld [vmem:[#allocation17 + $0x34] sm:$0xf]
          %v2626 = vld [vmem:[#allocation17 + $0x38] sm:$0xf]
          %v2627 = vld [vmem:[#allocation17 + $0x3c] sm:$0xf]
          %v2628 = vld [vmem:[%s16] sm:$0x1]
          %v2645 = vunpack.c.l.b16 %v2612
          %v2646 = vunpack.c.l.b16 %v2613
          %v2647 = vunpack.c.l.b16 %v2614
          %v2648 = vunpack.c.l.b16 %v2615
          %v2649 = vunpack.c.l.b16 %v2616
          %v2650 = vunpack.c.l.b16 %v2617
          %v2651 = vunpack.c.l.b16 %v2618
          %v2652 = vunpack.c.l.b16 %v2619
          %v2653 = vunpack.c.l.b16 %v2620
          %v2654 = vunpack.c.l.b16 %v2621
          %v2655 = vunpack.c.l.b16 %v2622
          %v2656 = vunpack.c.l.b16 %v2623
          %v2657 = vunpack.c.l.b16 %v2624
          %v2658 = vunpack.c.l.b16 %v2625
          %v2659 = vunpack.c.l.b16 %v2626
          %v2660 = vunpack.c.l.b16 %v2627
          %v2661 = vpack.c.b16 %v2646, %v2645
          %v2662 = vpack.c.b16 %v2648, %v2647
          %v2663 = vpack.c.b16 %v2650, %v2649
          %v2664 = vpack.c.b16 %v2652, %v2651
          %v2665 = vpack.c.b16 %v2654, %v2653
          %v2666 = vpack.c.b16 %v2656, %v2655
          %v2667 = vpack.c.b16 %v2658, %v2657
          %v2668 = vpack.c.b16 %v2660, %v2659
          %2677 = vmatpush.bf16.msra.mxu0 %v2668
          %2678 = vmatpush.bf16.msra.mxu0 %v2667
          %2679 = vmatpush.bf16.msra.mxu0 %v2666
          %2680 = vmatpush.bf16.msra.mxu0 %v2665
          %2681 = vmatpush.bf16.msra.mxu0 %v2664
          %2682 = vmatpush.bf16.msra.mxu0 %v2663
          %2683 = vmatpush.bf16.msra.mxu0 %v2662
          %2684 = vmatpush.bf16.msra.mxu0 %v2661
          %2685 = vmatmul.bf16.gmra.mxu0 %v2611
          %v2686 = vpop.f32.mrf.mxu0
          %v2687 = vadd.f32 %v2628, %v2686
          %v2688 = vpop.f32.mrf.mxu0
          %2689 = vdwg.mxu0
          %2690 = vst [vmem:[%s920] sm:$0x1] %v2687
        $region132: #{forward.1} parent=87 // pred_fallthru
          _
        %s2691 = sand.u32 %s488, 1
        %s2692 = scalar_lea.sflag [#allocation5], %s2691
        %s2693 = sand.u32 %s488, 1
        %s2694 = scalar_lea.vmem [#allocation18], %s2693
        // Predicated region
        $region133: #{forward.1} parent=87 // pred_check
          %p2695 = pneg %p498
        $region134: #{forward.1} parent=87 // pred_check_branch
          %2697 = sbr.rel (%p2695) target = $region136
        $region135: #{forward.1} parent=87 // pred_region
          %2699 = vsyncadd %s2692, 0
          %s2700 = scalar_lea.hbm %s17, %s50
          %s2702 = sshll.u32 %s2694, 4
          %s2703 = int_to_ptr.vmem [resolvable:$true] %s2702
          %s2704 = sshll.u32 %s2700, 4
          %s2705 = int_to_ptr.hbm [resolvable:$true] %s2704
          %2707 = dma.vmem_to_hbm [thread:$0]  %s2703, 16, %s2705, %s2692
        $region136: #{forward.1} parent=87 // pred_fallthru
          _
      $region88: #{forward.1} parent=5 // pred_fallthru
        _
      %p2708 = scmp.le.s32.totalorder 2, %s41
      // Predicated region
      $region137: #{forward.1} parent=5 // pred_check
        %p2709 = pneg %p2708
      $region138: #{forward.1} parent=5 // pred_check_branch
        %2711 = sbr.rel (%p2709) target = $region140
      $region139: #{forward.1} parent=5 // pred_region
        %s2712 = ssub.s32 %s41, 2
        // Predicated region
        $region141: #{forward.1} parent=139 // pred_check
          %p2713 = pneg %p504
        $region142: #{forward.1} parent=139 // pred_check_branch
          %2715 = sbr.rel (%p2713) target = $region144
        $region143: #{forward.1} parent=139 // pred_region
          %s2716 = sand.u32 %s489, 1
          %s2717 = scalar_lea.sflag [#allocation5], %s2716
          %s2718 = sand.u32 %s489, 1
          %s2719 = scalar_lea.vmem [#allocation18], %s2718
          %2721 = dma.done %s2717, 16
        $region144: #{forward.1} parent=139 // pred_fallthru
          _
      $region140: #{forward.1} parent=5 // pred_fallthru
        _
    $region6: #{forward.1} parent=1 // loop_footer
      %s45 = sadd.s32 1, %s41
    $region7: #{forward.1} parent=1 // loop_footer_branch
      %40 = sbr.rel target = $region3
    $region8: #{forward.1} parent=1 // loop_exit
      _
    %2722 = vsyncpa [#allocation4], 1
    %s2723 = scalar_lea.sflag [#allocation4], 1
    %2724 = vsyncpa %s2723, 1
    %2725 = vsyncpa [#allocation7], 1
    %s2726 = scalar_lea.sflag [#allocation7], 1
    %2727 = vsyncpa %s2726, 1
    %2728 = vsyncpa [#allocation10], 1
    %s2729 = scalar_lea.sflag [#allocation10], 1
    %2730 = vsyncpa %s2729, 1
    %2731 = vsyncpa [#allocation13], 1
    %s2732 = scalar_lea.sflag [#allocation13], 1
    %2733 = vsyncpa %s2732, 1
    %2734 = vsyncpa [#allocation16], 1
    %s2735 = scalar_lea.sflag [#allocation16], 1
    %2736 = vsyncpa %s2735, 1
    %2737 = vsyncpa [#allocation5], 1
    %s2738 = scalar_lea.sflag [#allocation5], 1
    %2739 = vsyncpa %s2738, 1

</llo_original>
